<compile_context>
chip_gen: v5e
topology: v5e:2x2
jax: 0.10.0
libtpu: 0.0.40
codegen_flags: <defaults>
</compile_context>

<pallas_src>
import math
import jax
import jax.numpy as jnp
from jax.experimental import pallas as pl
from jax.experimental.pallas import tpu as pltpu

D_K = 64
D_V = 64
N_HEADS = 8
LN_EPS = 1e-5
COMPUTE_DTYPE = jnp.bfloat16   # matmul input dtype (f32 accumulation on the MXU)


def _mha_kernel(xq_ref, xk_ref, xv_ref, mask_ref,
                wq_ref, wk_ref, wv_ref, wo_ref,
                out_ref, attn_ref):
    f32 = jnp.float32

    xq = xq_ref[0]                      # [S, D] f32 (kept f32 for the residual)
    xk = xk_ref[0]                      # [S, D]
    xv = xv_ref[0]                      # [S, D]
    mask = mask_ref[0]                  # [S, S] f32 (nonzero => masked)

    S, D = xq.shape
    H = N_HEADS

    # Broadcast activations to head-leading layout once (tiny; avoids any
    # in-kernel transpose) and cast to bf16 for the MXU.
    xq_b = jnp.broadcast_to(xq.astype(COMPUTE_DTYPE)[None], (H, S, D))
    xk_b = jnp.broadcast_to(xk.astype(COMPUTE_DTYPE)[None], (H, S, D))
    xv_b = jnp.broadcast_to(xv.astype(COMPUTE_DTYPE)[None], (H, S, D))

    # Batched per-head projections: [H,S,D] x [H,D,d_k] -> [H,S,d_k]  (f32 acc)
    bmm = (((2,), (1,)), ((0,), (0,)))
    q = jax.lax.dot_general(xq_b, wq_ref[...], bmm, preferred_element_type=f32)
    k = jax.lax.dot_general(xk_b, wk_ref[...], bmm, preferred_element_type=f32)
    v = jax.lax.dot_general(xv_b, wv_ref[...], bmm, preferred_element_type=f32)

    # Scores for all heads in one contraction: [H,S,d_k] x [H,S,d_k] -> [H,S,S]
    # (contract d_k directly — no transpose).
    scores = jax.lax.dot_general(
        q.astype(COMPUTE_DTYPE), k.astype(COMPUTE_DTYPE),
        (((2,), (2,)), ((0,), (0,))), preferred_element_type=f32)
    scores = scores * (1.0 / math.sqrt(D_K))

    # masked_fill_(mask, -1e9): applied once for all heads.
    scores = jnp.where(mask[None] != 0.0, jnp.float32(-1e9), scores)

    # Softmax over the key axis (EUP exp + approx reciprocal, no divide).
    m = jnp.max(scores, axis=-1, keepdims=True)
    e = jnp.exp(scores - m)
    denom = jnp.sum(e, axis=-1, keepdims=True)
    attn = e * pl.reciprocal(denom, approx=True)                     # [H,S,S]

    # Single slab write of the attention probabilities.
    attn_ref[0] = attn.astype(attn_ref.dtype)

    # Context: [H,S,S] x [H,S,d_v] -> [H,S,d_v]
    ctx = jax.lax.dot_general(
        attn.astype(COMPUTE_DTYPE), v.astype(COMPUTE_DTYPE),
        (((2,), (1,)), ((0,), (0,))), preferred_element_type=f32)

    # Output projection: per-head partial products summed over heads
    # (equivalent to concat(context) @ W_O, with no lane-dim concatenate).
    proj_h = jax.lax.dot_general(
        ctx.astype(COMPUTE_DTYPE), wo_ref[...],
        (((2,), (1,)), ((0,), (0,))), preferred_element_type=f32)    # [H,S,D]
    proj = jnp.sum(proj_h, axis=0)                                   # [S,D]

    # Residual + LayerNorm (no affine: default weight=1, bias=0; biased variance).
    y = proj + xq
    mean = jnp.mean(y, axis=-1, keepdims=True)
    var = jnp.mean(jnp.square(y - mean), axis=-1, keepdims=True)
    out_ref[0] = ((y - mean) * jax.lax.rsqrt(var + LN_EPS)).astype(out_ref.dtype)


def multi_head_attention(input_Q, input_K, input_V, attn_mask,
                         w_q, w_k, w_v, w_o):
    """input_*: [B, S, D] f32; attn_mask: [B, S, S] (nonzero => masked);
    weights stored [in, out] (i.e. nn.Linear.weight.T).
    Returns (output [B,S,D] f32, attn [B,H,S,S] f32)."""
    B, S, D = input_Q.shape
    H = N_HEADS

    mask_f = (attn_mask != 0).astype(jnp.float32)

    # Pre-split weights per head (head-leading) and cast to bf16 in the wrapper
    # so the kernel does zero relayout work and weight DMA is halved.
    wq_r = w_q.reshape(D, H, D_K).transpose(1, 0, 2).astype(COMPUTE_DTYPE)  # [H,D,d_k]
    wk_r = w_k.reshape(D, H, D_K).transpose(1, 0, 2).astype(COMPUTE_DTYPE)  # [H,D,d_k]
    wv_r = w_v.reshape(D, H, D_V).transpose(1, 0, 2).astype(COMPUTE_DTYPE)  # [H,D,d_v]
    wo_r = w_o.reshape(H, D_V, D).astype(COMPUTE_DTYPE)                     # [H,d_v,D]

    out_shapes = (
        jax.ShapeDtypeStruct((B, S, D), jnp.float32),
        jax.ShapeDtypeStruct((B, H, S, S), jnp.float32),
    )

    grid_spec = pltpu.PrefetchScalarGridSpec(
        num_scalar_prefetch=0,
        grid=(B,),
        in_specs=[
            pl.BlockSpec((1, S, D), lambda b: (b, 0, 0)),       # input_Q
            pl.BlockSpec((1, S, D), lambda b: (b, 0, 0)),       # input_K
            pl.BlockSpec((1, S, D), lambda b: (b, 0, 0)),       # input_V
            pl.BlockSpec((1, S, S), lambda b: (b, 0, 0)),       # mask
            pl.BlockSpec((H, D, D_K), lambda b: (0, 0, 0)),     # W_Q  [H,D,d_k]
            pl.BlockSpec((H, D, D_K), lambda b: (0, 0, 0)),     # W_K  [H,D,d_k]
            pl.BlockSpec((H, D, D_V), lambda b: (0, 0, 0)),     # W_V  [H,D,d_v]
            pl.BlockSpec((H, D_V, D), lambda b: (0, 0, 0)),     # fc   [H,d_v,D]
        ],
        out_specs=[
            pl.BlockSpec((1, S, D), lambda b: (b, 0, 0)),
            pl.BlockSpec((1, H, S, S), lambda b: (b, 0, 0, 0)),
        ],
    )

    return pl.pallas_call(
        _mha_kernel,
        out_shape=out_shapes,
        grid_spec=grid_spec,
        compiler_params=pltpu.CompilerParams(
            dimension_semantics=("parallel",)),
    )(input_Q, input_K, input_V, mask_f, wq_r, wk_r, wv_r, wo_r)


def _reference(input_Q, input_K, input_V, attn_mask, w_q, w_k, w_v, w_o):
    """Pure-JAX f32 reference matching the PyTorch module."""
    B, S, D = input_Q.shape
    H = N_HEADS
    q = (input_Q @ w_q).reshape(B, S, H, D_K).transpose(0, 2, 1, 3)
    k = (input_K @ w_k).reshape(B, S, H, D_K).transpose(0, 2, 1, 3)
    v = (input_V @ w_v).reshape(B, S, H, D_V).transpose(0, 2, 1, 3)
    scores = jnp.einsum('bhqd,bhkd->bhqk', q, k) / math.sqrt(D_K)
    mask = (attn_mask != 0)[:, None, :, :]
    scores = jnp.where(mask, -1e9, scores)
    attn = jax.nn.softmax(scores, axis=-1)
    ctx = jnp.einsum('bhqk,bhkd->bhqd', attn, v)
    ctx = ctx.transpose(0, 2, 1, 3).reshape(B, S, H * D_V)
    out = ctx @ w_o + input_Q
    mean = out.mean(-1, keepdims=True)
    var = ((out - mean) ** 2).mean(-1, keepdims=True)
    return (out - mean) * jax.lax.rsqrt(var + LN_EPS), attn


if __name__ == "__main__":
    B, S, D = 2, 8, 32          # batch, seq_len, embed_size (d_model)
    key = jax.random.PRNGKey(0)
    k1, k2, k3, k4, k5, k6, k7, k8 = jax.random.split(key, 8)

    input_Q = jax.random.normal(k1, (B, S, D), jnp.float32)
    input_K = jax.random.normal(k2, (B, S, D), jnp.float32)
    input_V = jax.random.normal(k3, (B, S, D), jnp.float32)
    # boolean-style mask: mask out a few positions deterministically
    attn_mask = (jax.random.uniform(k4, (B, S, S)) > 0.8).astype(jnp.int32)

    # Deterministic synthetic weights, stored [in, out].
    scale = 1.0 / math.sqrt(D)
    w_q = jax.random.normal(k5, (D, N_HEADS * D_K), jnp.float32) * scale
    w_k = jax.random.normal(k6, (D, N_HEADS * D_K), jnp.float32) * scale
    w_v = jax.random.normal(k7, (D, N_HEADS * D_V), jnp.float32) * scale
    w_o = jax.random.normal(k8, (N_HEADS * D_V, D), jnp.float32) / math.sqrt(N_HEADS * D_V)

    out, attn = multi_head_attention(input_Q, input_K, input_V, attn_mask,
                                     w_q, w_k, w_v, w_o)
    jax.block_until_ready((out, attn))

    ref_out, ref_attn = _reference(input_Q, input_K, input_V, attn_mask,
                                   w_q, w_k, w_v, w_o)

    # Kernel uses bf16 matmul inputs (f32 accumulation) + approx reciprocal, so
    # compare against the f32 reference with correspondingly loosened tolerances.
    max_out_err = float(jnp.max(jnp.abs(out - ref_out)))
    max_attn_err = float(jnp.max(jnp.abs(attn - ref_attn)))
    print(f"max |out - ref|  = {max_out_err:.3e}")
    print(f"max |attn - ref| = {max_attn_err:.3e}")
    assert jnp.allclose(attn, ref_attn, atol=3e-2, rtol=0.0)
    assert jnp.allclose(out, ref_out, atol=1e-1, rtol=1e-1)

    print("KERNEL_OK")
</pallas_src>

<mosaic_0001>
module attributes {stable_mosaic.version = 11 : i64} {
  func.func @_mha_kernel(%arg0: i32, %arg1: memref<1x8x32xf32, #tpu.memory_space<vmem>>, %arg2: memref<1x8x32xf32, #tpu.memory_space<vmem>>, %arg3: memref<1x8x32xf32, #tpu.memory_space<vmem>>, %arg4: memref<1x8x8xf32, #tpu.memory_space<vmem>>, %arg5: memref<8x32x64xbf16, #tpu.memory_space<vmem>>, %arg6: memref<8x32x64xbf16, #tpu.memory_space<vmem>>, %arg7: memref<8x32x64xbf16, #tpu.memory_space<vmem>>, %arg8: memref<8x64x32xbf16, #tpu.memory_space<vmem>>, %arg9: memref<1x8x32xf32, #tpu.memory_space<vmem>>, %arg10: memref<1x8x8x8xf32, #tpu.memory_space<vmem>>) attributes {dimension_semantics = [#tpu.dimension_semantics<parallel>], iteration_bounds = array<i64: 2>, scalar_prefetch = 0 : i64, scratch_operands = 0 : i64, tpu.core_type = #tpu.core_type<tc>, window_params = [{transform_indices = @transform_0, window_bounds = array<i64: 1, 8, 32>}, {transform_indices = @transform_1, window_bounds = array<i64: 1, 8, 32>}, {transform_indices = @transform_2, window_bounds = array<i64: 1, 8, 32>}, {transform_indices = @transform_3, window_bounds = array<i64: 1, 8, 8>}, {pipeline_mode = #tpu.pipeline_mode<synchronous>, transform_indices = @transform_4, window_bounds = array<i64: 8, 32, 64>}, {pipeline_mode = #tpu.pipeline_mode<synchronous>, transform_indices = @transform_5, window_bounds = array<i64: 8, 32, 64>}, {pipeline_mode = #tpu.pipeline_mode<synchronous>, transform_indices = @transform_6, window_bounds = array<i64: 8, 32, 64>}, {pipeline_mode = #tpu.pipeline_mode<synchronous>, transform_indices = @transform_7, window_bounds = array<i64: 8, 64, 32>}, {transform_indices = @transform_8, window_bounds = array<i64: 1, 8, 32>}, {transform_indices = @transform_9, window_bounds = array<i64: 1, 8, 8, 8>}]} {
    %c0 = arith.constant 0 : index
    %c0_0 = arith.constant 0 : index
    %c0_1 = arith.constant 0 : index
    %0 = vector.load %arg1[%c0, %c0_0, %c0_1] : memref<1x8x32xf32, #tpu.memory_space<vmem>>, vector<1x8x32xf32>
    %1 = vector.shape_cast %0 : vector<1x8x32xf32> to vector<8x32xf32>
    %c0_2 = arith.constant 0 : index
    %c0_3 = arith.constant 0 : index
    %c0_4 = arith.constant 0 : index
    %2 = vector.load %arg2[%c0_2, %c0_3, %c0_4] : memref<1x8x32xf32, #tpu.memory_space<vmem>>, vector<1x8x32xf32>
    %3 = vector.shape_cast %2 : vector<1x8x32xf32> to vector<8x32xf32>
    %c0_5 = arith.constant 0 : index
    %c0_6 = arith.constant 0 : index
    %c0_7 = arith.constant 0 : index
    %4 = vector.load %arg3[%c0_5, %c0_6, %c0_7] : memref<1x8x32xf32, #tpu.memory_space<vmem>>, vector<1x8x32xf32>
    %5 = vector.shape_cast %4 : vector<1x8x32xf32> to vector<8x32xf32>
    %c0_8 = arith.constant 0 : index
    %c0_9 = arith.constant 0 : index
    %c0_10 = arith.constant 0 : index
    %6 = vector.load %arg4[%c0_8, %c0_9, %c0_10] : memref<1x8x8xf32, #tpu.memory_space<vmem>>, vector<1x8x8xf32>
    %7 = vector.shape_cast %6 : vector<1x8x8xf32> to vector<8x8xf32>
    %8 = arith.truncf %1 : vector<8x32xf32> to vector<8x32xbf16>
    %9 = vector.shape_cast %8 : vector<8x32xbf16> to vector<1x8x32xbf16>
    %10 = vector.shape_cast %9 : vector<1x8x32xbf16> to vector<1x8x32xbf16>
    %11 = vector.broadcast %10 : vector<1x8x32xbf16> to vector<8x8x32xbf16>
    %12 = arith.truncf %3 : vector<8x32xf32> to vector<8x32xbf16>
    %13 = vector.shape_cast %12 : vector<8x32xbf16> to vector<1x8x32xbf16>
    %14 = vector.shape_cast %13 : vector<1x8x32xbf16> to vector<1x8x32xbf16>
    %15 = vector.broadcast %14 : vector<1x8x32xbf16> to vector<8x8x32xbf16>
    %16 = arith.truncf %5 : vector<8x32xf32> to vector<8x32xbf16>
    %17 = vector.shape_cast %16 : vector<8x32xbf16> to vector<1x8x32xbf16>
    %18 = vector.shape_cast %17 : vector<1x8x32xbf16> to vector<1x8x32xbf16>
    %19 = vector.broadcast %18 : vector<1x8x32xbf16> to vector<8x8x32xbf16>
    %c0_11 = arith.constant 0 : index
    %c0_12 = arith.constant 0 : index
    %c0_13 = arith.constant 0 : index
    %20 = vector.load %arg5[%c0_11, %c0_12, %c0_13] : memref<8x32x64xbf16, #tpu.memory_space<vmem>>, vector<8x32x64xbf16>
    %cst = arith.constant dense<0.000000e+00> : vector<8x8x64xf32>
    %21 = tpu.matmul %11, %20, %cst {dimension_numbers = #tpu.dot_dimension_numbers<[2], [1], [1], [2], [0, 0, 0, 1, 1, 2], [0], [0]>} : vector<8x8x32xbf16>, vector<8x32x64xbf16>, vector<8x8x64xf32> -> vector<8x8x64xf32>
    %c0_14 = arith.constant 0 : index
    %c0_15 = arith.constant 0 : index
    %c0_16 = arith.constant 0 : index
    %22 = vector.load %arg6[%c0_14, %c0_15, %c0_16] : memref<8x32x64xbf16, #tpu.memory_space<vmem>>, vector<8x32x64xbf16>
    %cst_17 = arith.constant dense<0.000000e+00> : vector<8x8x64xf32>
    %23 = tpu.matmul %15, %22, %cst_17 {dimension_numbers = #tpu.dot_dimension_numbers<[2], [1], [1], [2], [0, 0, 0, 1, 1, 2], [0], [0]>} : vector<8x8x32xbf16>, vector<8x32x64xbf16>, vector<8x8x64xf32> -> vector<8x8x64xf32>
    %c0_18 = arith.constant 0 : index
    %c0_19 = arith.constant 0 : index
    %c0_20 = arith.constant 0 : index
    %24 = vector.load %arg7[%c0_18, %c0_19, %c0_20] : memref<8x32x64xbf16, #tpu.memory_space<vmem>>, vector<8x32x64xbf16>
    %cst_21 = arith.constant dense<0.000000e+00> : vector<8x8x64xf32>
    %25 = tpu.matmul %19, %24, %cst_21 {dimension_numbers = #tpu.dot_dimension_numbers<[2], [1], [1], [2], [0, 0, 0, 1, 1, 2], [0], [0]>} : vector<8x8x32xbf16>, vector<8x32x64xbf16>, vector<8x8x64xf32> -> vector<8x8x64xf32>
    %26 = arith.truncf %21 : vector<8x8x64xf32> to vector<8x8x64xbf16>
    %27 = arith.truncf %23 : vector<8x8x64xf32> to vector<8x8x64xbf16>
    %cst_22 = arith.constant dense<0.000000e+00> : vector<8x8x8xf32>
    %28 = tpu.matmul %26, %27, %cst_22 {dimension_numbers = #tpu.dot_dimension_numbers<[2], [2], [1], [1], [0, 0, 0, 1, 1, 1], [0], [0]>} : vector<8x8x64xbf16>, vector<8x8x64xbf16>, vector<8x8x8xf32> -> vector<8x8x8xf32>
    %cst_23 = arith.constant 1.250000e-01 : f32
    %29 = vector.broadcast %cst_23 : f32 to vector<8x8x8xf32>
    %30 = arith.mulf %28, %29 : vector<8x8x8xf32>
    %31 = vector.shape_cast %7 : vector<8x8xf32> to vector<1x8x8xf32>
    %cst_24 = arith.constant 0.000000e+00 : f32
    %32 = vector.broadcast %cst_24 : f32 to vector<1x8x8xf32>
    %33 = arith.cmpf one, %31, %32 : vector<1x8x8xf32>
    %cst_25 = arith.constant -1.000000e+09 : f32
    %34 = vector.shape_cast %33 : vector<1x8x8xi1> to vector<1x8x8xi1>
    %35 = vector.broadcast %34 : vector<1x8x8xi1> to vector<8x8x8xi1>
    %36 = vector.broadcast %cst_25 : f32 to vector<8x8x8xf32>
    %37 = arith.select %35, %36, %30 : vector<8x8x8xi1>, vector<8x8x8xf32>
    %cst_26 = arith.constant dense<0xFF800000> : vector<8x8xf32>
    %38 = vector.multi_reduction <maximumf>, %37, %cst_26 [2] : vector<8x8x8xf32> to vector<8x8xf32>
    %39 = vector.shape_cast %38 : vector<8x8xf32> to vector<8x8x1xf32>
    %40 = vector.broadcast %39 : vector<8x8x1xf32> to vector<8x8x8xf32>
    %41 = arith.subf %37, %40 : vector<8x8x8xf32>
    %42 = math.exp %41 : vector<8x8x8xf32>
    %cst_27 = arith.constant dense<0.000000e+00> : vector<8x8xf32>
    %43 = vector.multi_reduction <add>, %42, %cst_27 [2] : vector<8x8x8xf32> to vector<8x8xf32>
    %44 = vector.shape_cast %43 : vector<8x8xf32> to vector<8x8x1xf32>
    %45 = tpu.reciprocal %44 {approx = true} : vector<8x8x1xf32> -> vector<8x8x1xf32>
    %46 = vector.broadcast %45 : vector<8x8x1xf32> to vector<8x8x8xf32>
    %47 = arith.mulf %42, %46 : vector<8x8x8xf32>
    %c0_28 = arith.constant 0 : index
    %c0_29 = arith.constant 0 : index
    %c0_30 = arith.constant 0 : index
    %c0_31 = arith.constant 0 : index
    %48 = vector.load %arg10[%c0_28, %c0_29, %c0_30, %c0_31] : memref<1x8x8x8xf32, #tpu.memory_space<vmem>>, vector<1x8x8x8xf32>
    %49 = vector.shape_cast %48 : vector<1x8x8x8xf32> to vector<8x8x8xf32>
    %50 = vector.shape_cast %47 : vector<8x8x8xf32> to vector<1x8x8x8xf32>
    tpu.vector_store %arg10[%c0_28, %c0_29, %c0_30, %c0_31], %50 {strides = array<i32>} : memref<1x8x8x8xf32, #tpu.memory_space<vmem>>, vector<1x8x8x8xf32>,
    %51 = arith.truncf %47 : vector<8x8x8xf32> to vector<8x8x8xbf16>
    %52 = arith.truncf %25 : vector<8x8x64xf32> to vector<8x8x64xbf16>
    %cst_32 = arith.constant dense<0.000000e+00> : vector<8x8x64xf32>
    %53 = tpu.matmul %51, %52, %cst_32 {dimension_numbers = #tpu.dot_dimension_numbers<[2], [1], [1], [2], [0, 0, 0, 1, 1, 2], [0], [0]>} : vector<8x8x8xbf16>, vector<8x8x64xbf16>, vector<8x8x64xf32> -> vector<8x8x64xf32>
    %54 = arith.truncf %53 : vector<8x8x64xf32> to vector<8x8x64xbf16>
    %c0_33 = arith.constant 0 : index
    %c0_34 = arith.constant 0 : index
    %c0_35 = arith.constant 0 : index
    %55 = vector.load %arg8[%c0_33, %c0_34, %c0_35] : memref<8x64x32xbf16, #tpu.memory_space<vmem>>, vector<8x64x32xbf16>
    %cst_36 = arith.constant dense<0.000000e+00> : vector<8x8x32xf32>
    %56 = tpu.matmul %54, %55, %cst_36 {dimension_numbers = #tpu.dot_dimension_numbers<[2], [1], [1], [2], [0, 0, 0, 1, 1, 2], [0], [0]>} : vector<8x8x64xbf16>, vector<8x64x32xbf16>, vector<8x8x32xf32> -> vector<8x8x32xf32>
    %cst_37 = arith.constant dense<0.000000e+00> : vector<8x32xf32>
    %57 = vector.multi_reduction <add>, %56, %cst_37 [0] : vector<8x8x32xf32> to vector<8x32xf32>
    %58 = arith.addf %57, %1 : vector<8x32xf32>
    %cst_38 = arith.constant dense<0.000000e+00> : vector<8xf32>
    %59 = vector.multi_reduction <add>, %58, %cst_38 [1] : vector<8x32xf32> to vector<8xf32>
    %60 = vector.shape_cast %59 : vector<8xf32> to vector<8x1xf32>
    %cst_39 = arith.constant 3.200000e+01 : f32
    %61 = vector.broadcast %cst_39 : f32 to vector<8x1xf32>
    %62 = arith.divf %60, %61 : vector<8x1xf32>
    %63 = vector.broadcast %62 : vector<8x1xf32> to vector<8x32xf32>
    %64 = arith.subf %58, %63 : vector<8x32xf32>
    %65 = arith.mulf %64, %64 : vector<8x32xf32>
    %cst_40 = arith.constant dense<0.000000e+00> : vector<8xf32>
    %66 = vector.multi_reduction <add>, %65, %cst_40 [1] : vector<8x32xf32> to vector<8xf32>
    %67 = vector.shape_cast %66 : vector<8xf32> to vector<8x1xf32>
    %cst_41 = arith.constant 3.200000e+01 : f32
    %68 = vector.broadcast %cst_41 : f32 to vector<8x1xf32>
    %69 = arith.divf %67, %68 : vector<8x1xf32>
    %70 = vector.broadcast %62 : vector<8x1xf32> to vector<8x32xf32>
    %71 = arith.subf %58, %70 : vector<8x32xf32>
    %cst_42 = arith.constant 9.99999974E-6 : f32
    %72 = vector.broadcast %cst_42 : f32 to vector<8x1xf32>
    %73 = arith.addf %69, %72 : vector<8x1xf32>
    %74 = math.rsqrt %73 : vector<8x1xf32>
    %75 = vector.broadcast %74 : vector<8x1xf32> to vector<8x32xf32>
    %76 = arith.mulf %71, %75 : vector<8x32xf32>
    %c0_43 = arith.constant 0 : index
    %c0_44 = arith.constant 0 : index
    %c0_45 = arith.constant 0 : index
    %77 = vector.load %arg9[%c0_43, %c0_44, %c0_45] : memref<1x8x32xf32, #tpu.memory_space<vmem>>, vector<1x8x32xf32>
    %78 = vector.shape_cast %77 : vector<1x8x32xf32> to vector<8x32xf32>
    %79 = vector.shape_cast %76 : vector<8x32xf32> to vector<1x8x32xf32>
    tpu.vector_store %arg9[%c0_43, %c0_44, %c0_45], %79 {strides = array<i32>} : memref<1x8x32xf32, #tpu.memory_space<vmem>>, vector<1x8x32xf32>,
    return
  }
  func.func @transform_0(%arg0: i32) -> (i32, i32, i32) {
    %c0_i32 = arith.constant 0 : i32
    %c0_i32_0 = arith.constant 0 : i32
    %c0_i32_1 = arith.constant 0 : i32
    return %arg0, %c0_i32, %c0_i32_0 : i32, i32, i32
  }
  func.func @transform_1(%arg0: i32) -> (i32, i32, i32) {
    %c0_i32 = arith.constant 0 : i32
    %c0_i32_0 = arith.constant 0 : i32
    %c0_i32_1 = arith.constant 0 : i32
    return %arg0, %c0_i32, %c0_i32_0 : i32, i32, i32
  }
  func.func @transform_2(%arg0: i32) -> (i32, i32, i32) {
    %c0_i32 = arith.constant 0 : i32
    %c0_i32_0 = arith.constant 0 : i32
    %c0_i32_1 = arith.constant 0 : i32
    return %arg0, %c0_i32, %c0_i32_0 : i32, i32, i32
  }
  func.func @transform_3(%arg0: i32) -> (i32, i32, i32) {
    %c0_i32 = arith.constant 0 : i32
    %c0_i32_0 = arith.constant 0 : i32
    %c0_i32_1 = arith.constant 0 : i32
    return %arg0, %c0_i32, %c0_i32_0 : i32, i32, i32
  }
  func.func @transform_4(%arg0: i32) -> (i32, i32, i32) {
    %c0_i32 = arith.constant 0 : i32
    %c0_i32_0 = arith.constant 0 : i32
    %c0_i32_1 = arith.constant 0 : i32
    %c0_i32_2 = arith.constant 0 : i32
    return %c0_i32, %c0_i32_0, %c0_i32_1 : i32, i32, i32
  }
  func.func @transform_5(%arg0: i32) -> (i32, i32, i32) {
    %c0_i32 = arith.constant 0 : i32
    %c0_i32_0 = arith.constant 0 : i32
    %c0_i32_1 = arith.constant 0 : i32
    %c0_i32_2 = arith.constant 0 : i32
    return %c0_i32, %c0_i32_0, %c0_i32_1 : i32, i32, i32
  }
  func.func @transform_6(%arg0: i32) -> (i32, i32, i32) {
    %c0_i32 = arith.constant 0 : i32
    %c0_i32_0 = arith.constant 0 : i32
    %c0_i32_1 = arith.constant 0 : i32
    %c0_i32_2 = arith.constant 0 : i32
    return %c0_i32, %c0_i32_0, %c0_i32_1 : i32, i32, i32
  }
  func.func @transform_7(%arg0: i32) -> (i32, i32, i32) {
    %c0_i32 = arith.constant 0 : i32
    %c0_i32_0 = arith.constant 0 : i32
    %c0_i32_1 = arith.constant 0 : i32
    %c0_i32_2 = arith.constant 0 : i32
    return %c0_i32, %c0_i32_0, %c0_i32_1 : i32, i32, i32
  }
  func.func @transform_8(%arg0: i32) -> (i32, i32, i32) {
    %c0_i32 = arith.constant 0 : i32
    %c0_i32_0 = arith.constant 0 : i32
    %c0_i32_1 = arith.constant 0 : i32
    return %arg0, %c0_i32, %c0_i32_0 : i32, i32, i32
  }
  func.func @transform_9(%arg0: i32) -> (i32, i32, i32, i32) {
    %c0_i32 = arith.constant 0 : i32
    %c0_i32_0 = arith.constant 0 : i32
    %c0_i32_1 = arith.constant 0 : i32
    %c0_i32_2 = arith.constant 0 : i32
    return %arg0, %c0_i32, %c0_i32_0, %c0_i32_1 : i32, i32, i32, i32
  }
}

</mosaic_0001>

<llo_original>
// kernel: tpu_custom_call.1
$region0: #{tpu_custom_call.1}
  #allocation0 [shape = 'u32[]', space=smem, size = 0x4, offset = 0x4, fixed_abs, tag = 'smem constant byte address 0x4 - core index']
  #allocation1 [shape = 'u32[72,128]{1,0:T(1,128)}', space=vmem, size = 0x9000, scoped, tag = 'internal scratch']
  %s0 = inlined_call_operand.hbm [shape: f32[2,8,32], index: 0, kind: input, shape index: {}]
  %s1 = inlined_call_operand.hbm [shape: f32[2,8,32], index: 1, kind: input, shape index: {}]
  %s2 = inlined_call_operand.hbm [shape: f32[2,8,32], index: 2, kind: input, shape index: {}]
  %s3 = inlined_call_operand.hbm [shape: f32[2,8,8], index: 3, kind: input, shape index: {}]
  %s4 = inlined_call_operand.vmem [shape: bf16[8,32,64], index: 4, kind: input, shape index: {}]
  %s5 = inlined_call_operand.vmem [shape: bf16[8,32,64], index: 5, kind: input, shape index: {}]
  %s6 = inlined_call_operand.vmem [shape: bf16[8,32,64], index: 6, kind: input, shape index: {}]
  %s7 = inlined_call_operand.vmem [shape: bf16[8,64,32], index: 7, kind: input, shape index: {}]
  %s8 = inlined_call_operand.hbm [shape: f32[2,8,32], index: 8, kind: output, shape index: {0}]
  %s9 = inlined_call_operand.hbm [shape: f32[2,8,8,8], index: 9, kind: output, shape index: {1}]
  %10 = xla_tuple %s8, %s9
  %s11 = sld [smem:[#allocation0]]
  $region89: #{tpu_custom_call.1} parent=0
    _
  %s13 = ssub.s32 1, %s11
  %s14 = scalar_select 0, %s13, %s11
  $region1: #{tpu_custom_call.1} parent=0
    #allocation2 [shape = 'u8[8192]{0}', space=vmem, size = 0x2000, scoped, tag = 'input window, operand 0']
    #allocation3 [shape = 's32[2]{0}', space=sflag, size = 0x8, scoped, tag = 'scoped memory for tpu_custom_call.1']
    #allocation4 [shape = 's32[2]{0}', space=sflag, size = 0x8, scoped, tag = 'scoped memory for tpu_custom_call.1']
    #allocation5 [shape = 'u8[8192]{0}', space=vmem, size = 0x2000, scoped, tag = 'input window, operand 1']
    #allocation6 [shape = 's32[2]{0}', space=sflag, size = 0x8, scoped, tag = 'scoped memory for tpu_custom_call.1']
    #allocation7 [shape = 'u8[8192]{0}', space=vmem, size = 0x2000, scoped, tag = 'input window, operand 2']
    #allocation8 [shape = 'u8[8192]{0}', space=vmem, size = 0x2000, scoped, tag = 'input window, operand 3']
    #allocation9 [shape = 's32[2]{0}', space=sflag, size = 0x8, scoped, tag = 'scoped memory for tpu_custom_call.1']
    #allocation10 [shape = 'u8[8192]{0}', space=vmem, size = 0x2000, scoped, tag = 'output window, operand 0']
    #allocation11 [shape = 'u8[65536]{0}', space=vmem, size = 0x10000, scoped, tag = 'output window, operand 1']
    #allocation12 [shape = 's32[2]{0}', space=sflag, size = 0x8, scoped, tag = 'scoped memory for tpu_custom_call.1']
    %15 = vsyncpa [#allocation3], 0
    %s16 = scalar_lea.sflag [#allocation3], 1
    %17 = vsyncpa %s16, 0
    %18 = vsyncpa [#allocation6], 0
    %s19 = scalar_lea.sflag [#allocation6], 1
    %20 = vsyncpa %s19, 0
    %21 = vsyncpa [#allocation9], 0
    %s22 = scalar_lea.sflag [#allocation9], 1
    %23 = vsyncpa %s22, 0
    %24 = vsyncpa [#allocation4], 0
    %s25 = scalar_lea.sflag [#allocation4], 1
    %26 = vsyncpa %s25, 0
    %27 = vsyncpa [#allocation12], 0
    %s28 = scalar_lea.sflag [#allocation12], 1
    %29 = vsyncpa %s28, 0
    loop: start=0, step=1, limit=4
    $region2: #{tpu_custom_call.1} parent=1 // loop_pre_header
      _
    $region3: #{tpu_custom_call.1} parent=1 // loop_header
      %s31 = sphi 0, %s35
      %p32 = scmp.ge.s32.totalorder %s31, 4
      %s41 = sphi 0, %s43
      %s44 = sphi 0, %s41
      %s45 = sphi 0, %s44
      %s61 = sphi 0, %s45
      %s67 = sphi 0, %s69
      %s70 = sphi 0, %s67
      %s71 = sphi 0, %s70
      %s87 = sphi 0, %s71
      %s93 = sphi 0, %s95
      %s96 = sphi 0, %s93
      %s97 = sphi 0, %s96
      %s113 = sphi 0, %s97
      %s119 = sphi 0, %s121
      %s122 = sphi 0, %s119
      %s123 = sphi 0, %s122
      %s139 = sphi 0, %s123
      %s143 = sphi 0, %s143
      %s145 = sphi 0, %s143
      %s146 = sphi 0, %s145
      %s160 = sphi 0, %s146
      %s164 = sphi 0, %s164
      %s166 = sphi 0, %s164
      %s167 = sphi 0, %s166
      %s181 = sphi 0, %s167
      %s185 = sphi 0, %s185
      %s187 = sphi 0, %s185
      %s188 = sphi 0, %s187
      %s202 = sphi 0, %s188
      %s206 = sphi 0, %s206
      %s208 = sphi 0, %s206
      %s209 = sphi 0, %s208
      %s223 = sphi 0, %s209
      %s229 = sphi 0, %s231
      %s232 = sphi 0, %s229
      %s233 = sphi 0, %s232
      %s249 = sphi 0, %s233
      %s255 = sphi 0, %s257
      %s258 = sphi 0, %s255
      %s259 = sphi 0, %s258
      %s275 = sphi 0, %s259
    $region4: #{tpu_custom_call.1} parent=1 // loop_header_branch
      %34 = sbr.rel (%p32) target = $region8
    $region5: #{tpu_custom_call.1} parent=1 // loop_body
      %s36 = ssub.s32 %s31, 1
      %s37 = ssub.s32 %s31, 2
      %s38 = sadd.s32 %s31, 1
      %s39 = ssub.s32 %s31, %s38
      %p40 = scmp.eq.s32.totalorder %s39, 0
      %s42 = sadd.s32 %s41, 1
      %s43 = scalar_select %p40, %s41, %s42
      %p46 = pneg %p40
      %p47 = scmp.eq.s32.totalorder %s31, 1
      %p48 = por %p46, %p47
      %p49 = scmp.ne.s32.totalorder %s41, %s44
      %p50 = scmp.eq.s32.totalorder %s31, 0
      %p51 = por %p49, %p50
      %p52 = scmp.ne.s32.totalorder %s41, %s44
      %p53 = scmp.eq.s32.totalorder %s36, 1
      %p54 = por %p52, %p53
      %p55 = scmp.ne.s32.totalorder %s44, %s45
      %p56 = scmp.eq.s32.totalorder %s36, 0
      %p57 = por %p55, %p56
      %p58 = scmp.ne.s32.totalorder %s44, %s45
      %p59 = scmp.eq.s32.totalorder %s37, 1
      %p60 = por %p58, %p59
      %p62 = scmp.ne.s32.totalorder %s45, %s61
      %p63 = scmp.eq.s32.totalorder %s37, 0
      %p64 = por %p62, %p63
      %s65 = ssub.s32 %s31, %s38
      %p66 = scmp.eq.s32.totalorder %s65, 0
      %s68 = sadd.s32 %s67, 1
      %s69 = scalar_select %p66, %s67, %s68
      %p72 = pneg %p66
      %p73 = scmp.eq.s32.totalorder %s31, 1
      %p74 = por %p72, %p73
      %p75 = scmp.ne.s32.totalorder %s67, %s70
      %p76 = scmp.eq.s32.totalorder %s31, 0
      %p77 = por %p75, %p76
      %p78 = scmp.ne.s32.totalorder %s67, %s70
      %p79 = scmp.eq.s32.totalorder %s36, 1
      %p80 = por %p78, %p79
      %p81 = scmp.ne.s32.totalorder %s70, %s71
      %p82 = scmp.eq.s32.totalorder %s36, 0
      %p83 = por %p81, %p82
      %p84 = scmp.ne.s32.totalorder %s70, %s71
      %p85 = scmp.eq.s32.totalorder %s37, 1
      %p86 = por %p84, %p85
      %p88 = scmp.ne.s32.totalorder %s71, %s87
      %p89 = scmp.eq.s32.totalorder %s37, 0
      %p90 = por %p88, %p89
      %s91 = ssub.s32 %s31, %s38
      %p92 = scmp.eq.s32.totalorder %s91, 0
      %s94 = sadd.s32 %s93, 1
      %s95 = scalar_select %p92, %s93, %s94
      %p98 = pneg %p92
      %p99 = scmp.eq.s32.totalorder %s31, 1
      %p100 = por %p98, %p99
      %p101 = scmp.ne.s32.totalorder %s93, %s96
      %p102 = scmp.eq.s32.totalorder %s31, 0
      %p103 = por %p101, %p102
      %p104 = scmp.ne.s32.totalorder %s93, %s96
      %p105 = scmp.eq.s32.totalorder %s36, 1
      %p106 = por %p104, %p105
      %p107 = scmp.ne.s32.totalorder %s96, %s97
      %p108 = scmp.eq.s32.totalorder %s36, 0
      %p109 = por %p107, %p108
      %p110 = scmp.ne.s32.totalorder %s96, %s97
      %p111 = scmp.eq.s32.totalorder %s37, 1
      %p112 = por %p110, %p111
      %p114 = scmp.ne.s32.totalorder %s97, %s113
      %p115 = scmp.eq.s32.totalorder %s37, 0
      %p116 = por %p114, %p115
      %s117 = ssub.s32 %s31, %s38
      %p118 = scmp.eq.s32.totalorder %s117, 0
      %s120 = sadd.s32 %s119, 1
      %s121 = scalar_select %p118, %s119, %s120
      %p124 = pneg %p118
      %p125 = scmp.eq.s32.totalorder %s31, 1
      %p126 = por %p124, %p125
      %p127 = scmp.ne.s32.totalorder %s119, %s122
      %p128 = scmp.eq.s32.totalorder %s31, 0
      %p129 = por %p127, %p128
      %p130 = scmp.ne.s32.totalorder %s119, %s122
      %p131 = scmp.eq.s32.totalorder %s36, 1
      %p132 = por %p130, %p131
      %p133 = scmp.ne.s32.totalorder %s122, %s123
      %p134 = scmp.eq.s32.totalorder %s36, 0
      %p135 = por %p133, %p134
      %p136 = scmp.ne.s32.totalorder %s122, %s123
      %p137 = scmp.eq.s32.totalorder %s37, 1
      %p138 = por %p136, %p137
      %p140 = scmp.ne.s32.totalorder %s123, %s139
      %p141 = scmp.eq.s32.totalorder %s37, 0
      %p142 = por %p140, %p141
      %s144 = sadd.s32 %s143, 1
      %p147 = scmp.eq.s32.totalorder %s31, 1
      %p148 = scmp.ne.s32.totalorder %s143, %s145
      %p149 = scmp.eq.s32.totalorder %s31, 0
      %p150 = por %p148, %p149
      %p151 = scmp.ne.s32.totalorder %s143, %s145
      %p152 = scmp.eq.s32.totalorder %s36, 1
      %p153 = por %p151, %p152
      %p154 = scmp.ne.s32.totalorder %s145, %s146
      %p155 = scmp.eq.s32.totalorder %s36, 0
      %p156 = por %p154, %p155
      %p157 = scmp.ne.s32.totalorder %s145, %s146
      %p158 = scmp.eq.s32.totalorder %s37, 1
      %p159 = por %p157, %p158
      %p161 = scmp.ne.s32.totalorder %s146, %s160
      %p162 = scmp.eq.s32.totalorder %s37, 0
      %p163 = por %p161, %p162
      %s165 = sadd.s32 %s164, 1
      %p168 = scmp.eq.s32.totalorder %s31, 1
      %p169 = scmp.ne.s32.totalorder %s164, %s166
      %p170 = scmp.eq.s32.totalorder %s31, 0
      %p171 = por %p169, %p170
      %p172 = scmp.ne.s32.totalorder %s164, %s166
      %p173 = scmp.eq.s32.totalorder %s36, 1
      %p174 = por %p172, %p173
      %p175 = scmp.ne.s32.totalorder %s166, %s167
      %p176 = scmp.eq.s32.totalorder %s36, 0
      %p177 = por %p175, %p176
      %p178 = scmp.ne.s32.totalorder %s166, %s167
      %p179 = scmp.eq.s32.totalorder %s37, 1
      %p180 = por %p178, %p179
      %p182 = scmp.ne.s32.totalorder %s167, %s181
      %p183 = scmp.eq.s32.totalorder %s37, 0
      %p184 = por %p182, %p183
      %s186 = sadd.s32 %s185, 1
      %p189 = scmp.eq.s32.totalorder %s31, 1
      %p190 = scmp.ne.s32.totalorder %s185, %s187
      %p191 = scmp.eq.s32.totalorder %s31, 0
      %p192 = por %p190, %p191
      %p193 = scmp.ne.s32.totalorder %s185, %s187
      %p194 = scmp.eq.s32.totalorder %s36, 1
      %p195 = por %p193, %p194
      %p196 = scmp.ne.s32.totalorder %s187, %s188
      %p197 = scmp.eq.s32.totalorder %s36, 0
      %p198 = por %p196, %p197
      %p199 = scmp.ne.s32.totalorder %s187, %s188
      %p200 = scmp.eq.s32.totalorder %s37, 1
      %p201 = por %p199, %p200
      %p203 = scmp.ne.s32.totalorder %s188, %s202
      %p204 = scmp.eq.s32.totalorder %s37, 0
      %p205 = por %p203, %p204
      %s207 = sadd.s32 %s206, 1
      %p210 = scmp.eq.s32.totalorder %s31, 1
      %p211 = scmp.ne.s32.totalorder %s206, %s208
      %p212 = scmp.eq.s32.totalorder %s31, 0
      %p213 = por %p211, %p212
      %p214 = scmp.ne.s32.totalorder %s206, %s208
      %p215 = scmp.eq.s32.totalorder %s36, 1
      %p216 = por %p214, %p215
      %p217 = scmp.ne.s32.totalorder %s208, %s209
      %p218 = scmp.eq.s32.totalorder %s36, 0
      %p219 = por %p217, %p218
      %p220 = scmp.ne.s32.totalorder %s208, %s209
      %p221 = scmp.eq.s32.totalorder %s37, 1
      %p222 = por %p220, %p221
      %p224 = scmp.ne.s32.totalorder %s209, %s223
      %p225 = scmp.eq.s32.totalorder %s37, 0
      %p226 = por %p224, %p225
      %s227 = ssub.s32 %s31, %s38
      %p228 = scmp.eq.s32.totalorder %s227, 0
      %s230 = sadd.s32 %s229, 1
      %s231 = scalar_select %p228, %s229, %s230
      %p234 = pneg %p228
      %p235 = scmp.eq.s32.totalorder %s31, 1
      %p236 = por %p234, %p235
      %p237 = scmp.ne.s32.totalorder %s229, %s232
      %p238 = scmp.eq.s32.totalorder %s31, 0
      %p239 = por %p237, %p238
      %p240 = scmp.ne.s32.totalorder %s229, %s232
      %p241 = scmp.eq.s32.totalorder %s36, 1
      %p242 = por %p240, %p241
      %p243 = scmp.ne.s32.totalorder %s232, %s233
      %p244 = scmp.eq.s32.totalorder %s36, 0
      %p245 = por %p243, %p244
      %p246 = scmp.ne.s32.totalorder %s232, %s233
      %p247 = scmp.eq.s32.totalorder %s37, 1
      %p248 = por %p246, %p247
      %p250 = scmp.ne.s32.totalorder %s233, %s249
      %p251 = scmp.eq.s32.totalorder %s37, 0
      %p252 = por %p250, %p251
      %s253 = ssub.s32 %s31, %s38
      %p254 = scmp.eq.s32.totalorder %s253, 0
      %s256 = sadd.s32 %s255, 1
      %s257 = scalar_select %p254, %s255, %s256
      %p260 = pneg %p254
      %p261 = scmp.eq.s32.totalorder %s31, 1
      %p262 = por %p260, %p261
      %p263 = scmp.ne.s32.totalorder %s255, %s258
      %p264 = scmp.eq.s32.totalorder %s31, 0
      %p265 = por %p263, %p264
      %p266 = scmp.ne.s32.totalorder %s255, %s258
      %p267 = scmp.eq.s32.totalorder %s36, 1
      %p268 = por %p266, %p267
      %p269 = scmp.ne.s32.totalorder %s258, %s259
      %p270 = scmp.eq.s32.totalorder %s36, 0
      %p271 = por %p269, %p270
      %p272 = scmp.ne.s32.totalorder %s258, %s259
      %p273 = scmp.eq.s32.totalorder %s37, 1
      %p274 = por %p272, %p273
      %p276 = scmp.ne.s32.totalorder %s259, %s275
      %p277 = scmp.eq.s32.totalorder %s37, 0
      %p278 = por %p276, %p277
      %p279 = scmp.le.s32.totalorder 1, %s31
      %p280 = scmp.lt.s32.totalorder %s31, 3
      %p281 = pnand %p279, %p280
      %p282 = pneg %p281
      // Predicated region
      $region9: #{tpu_custom_call.1} parent=5 // pred_check
        _
      $region10: #{tpu_custom_call.1} parent=5 // pred_check_branch
        %284 = sbr.rel (%p281) target = $region12
      $region11: #{tpu_custom_call.1} parent=5 // pred_region
        %s285 = ssub.s32 %s31, 1
        // Predicated region
        $region13: #{tpu_custom_call.1} parent=11 // pred_check
          %p286 = pneg %p156
        $region14: #{tpu_custom_call.1} parent=11 // pred_check_branch
          %288 = sbr.rel (%p286) target = $region16
        $region15: #{tpu_custom_call.1} parent=11 // pred_region
          _
        $region16: #{tpu_custom_call.1} parent=11 // pred_fallthru
          _
        // Predicated region
        $region17: #{tpu_custom_call.1} parent=11 // pred_check
          %p289 = pneg %p177
        $region18: #{tpu_custom_call.1} parent=11 // pred_check_branch
          %291 = sbr.rel (%p289) target = $region20
        $region19: #{tpu_custom_call.1} parent=11 // pred_region
          _
        $region20: #{tpu_custom_call.1} parent=11 // pred_fallthru
          _
        // Predicated region
        $region21: #{tpu_custom_call.1} parent=11 // pred_check
          %p292 = pneg %p198
        $region22: #{tpu_custom_call.1} parent=11 // pred_check_branch
          %294 = sbr.rel (%p292) target = $region24
        $region23: #{tpu_custom_call.1} parent=11 // pred_region
          _
        $region24: #{tpu_custom_call.1} parent=11 // pred_fallthru
          _
        // Predicated region
        $region25: #{tpu_custom_call.1} parent=11 // pred_check
          %p295 = pneg %p219
        $region26: #{tpu_custom_call.1} parent=11 // pred_check_branch
          %297 = sbr.rel (%p295) target = $region28
        $region27: #{tpu_custom_call.1} parent=11 // pred_region
          _
        $region28: #{tpu_custom_call.1} parent=11 // pred_fallthru
          _
      $region12: #{tpu_custom_call.1} parent=5 // pred_fallthru
        _
      %p298 = scmp.lt.s32.totalorder %s31, 2
      // Predicated region
      $region29: #{tpu_custom_call.1} parent=5 // pred_check
        %p299 = pneg %p298
      $region30: #{tpu_custom_call.1} parent=5 // pred_check_branch
        %301 = sbr.rel (%p299) target = $region32
      $region31: #{tpu_custom_call.1} parent=5 // pred_region
        // Predicated region
        $region33: #{tpu_custom_call.1} parent=31 // pred_check
          %p302 = pneg %p51
        $region34: #{tpu_custom_call.1} parent=31 // pred_check_branch
          %304 = sbr.rel (%p302) target = $region36
        $region35: #{tpu_custom_call.1} parent=31 // pred_region
          %s305 = sand.u32 %s41, 1
          %s306 = scalar_lea.sflag [#allocation3], %s305
          %s307 = sand.u32 %s41, 1
          %s308 = smul.addr %s307, 8
          %s309 = scalar_lea.vmem [#allocation2], %s308
          %311 = vsyncadd %s306, 0
          %s312 = smul.addr %s31, 8
          %s313 = scalar_lea.hbm %s0, %s312
          %s315 = sshll.u32 %s313, 4
          %s316 = int_to_ptr.hbm [resolvable:$true] %s315
          %s317 = sshll.u32 %s309, 4
          %s318 = int_to_ptr.vmem [resolvable:$true] %s317
          %320 = dma.hbm_to_vmem [thread:$0]  %s316, 128, %s318, %s306
        $region36: #{tpu_custom_call.1} parent=31 // pred_fallthru
          _
        // Predicated region
        $region37: #{tpu_custom_call.1} parent=31 // pred_check
          %p321 = pneg %p77
        $region38: #{tpu_custom_call.1} parent=31 // pred_check_branch
          %323 = sbr.rel (%p321) target = $region40
        $region39: #{tpu_custom_call.1} parent=31 // pred_region
          %s324 = sand.u32 %s31, 1
          %s325 = scalar_lea.sflag [#allocation6], %s324
          %s326 = sand.u32 %s67, 1
          %s327 = smul.addr %s326, 8
          %s328 = scalar_lea.vmem [#allocation5], %s327
          %330 = vsyncadd %s325, 0
          %s331 = smul.addr %s31, 8
          %s332 = scalar_lea.hbm %s1, %s331
          %s334 = sshll.u32 %s332, 4
          %s335 = int_to_ptr.hbm [resolvable:$true] %s334
          %s336 = sshll.u32 %s328, 4
          %s337 = int_to_ptr.vmem [resolvable:$true] %s336
          %339 = dma.hbm_to_vmem [thread:$0]  %s335, 128, %s337, %s325
        $region40: #{tpu_custom_call.1} parent=31 // pred_fallthru
          _
        // Predicated region
        $region41: #{tpu_custom_call.1} parent=31 // pred_check
          %p340 = pneg %p103
        $region42: #{tpu_custom_call.1} parent=31 // pred_check_branch
          %342 = sbr.rel (%p340) target = $region44
        $region43: #{tpu_custom_call.1} parent=31 // pred_region
          %s343 = sand.u32 %s31, 1
          %s344 = scalar_lea.sflag [#allocation6], %s343
          %s345 = sand.u32 %s93, 1
          %s346 = smul.addr %s345, 8
          %s347 = scalar_lea.vmem [#allocation7], %s346
          %349 = vsyncadd %s344, 0
          %s350 = smul.addr %s31, 8
          %s351 = scalar_lea.hbm %s2, %s350
          %s353 = sshll.u32 %s351, 4
          %s354 = int_to_ptr.hbm [resolvable:$true] %s353
          %s355 = sshll.u32 %s347, 4
          %s356 = int_to_ptr.vmem [resolvable:$true] %s355
          %358 = dma.hbm_to_vmem [thread:$0]  %s354, 128, %s356, %s344
        $region44: #{tpu_custom_call.1} parent=31 // pred_fallthru
          _
        // Predicated region
        $region45: #{tpu_custom_call.1} parent=31 // pred_check
          %p359 = pneg %p129
        $region46: #{tpu_custom_call.1} parent=31 // pred_check_branch
          %361 = sbr.rel (%p359) target = $region48
        $region47: #{tpu_custom_call.1} parent=31 // pred_region
          %s362 = sand.u32 %s119, 1
          %s363 = scalar_lea.sflag [#allocation9], %s362
          %s364 = sand.u32 %s119, 1
          %s365 = smul.addr %s364, 8
          %s366 = scalar_lea.vmem [#allocation8], %s365
          %368 = vsyncadd %s363, 0
          %s369 = smul.addr %s31, 8
          %s370 = scalar_lea.hbm %s3, %s369
          %s372 = sshll.u32 %s370, 4
          %s373 = int_to_ptr.hbm [resolvable:$true] %s372
          %s374 = sshll.u32 %s366, 4
          %s375 = int_to_ptr.vmem [resolvable:$true] %s374
          %377 = dma.hbm_to_vmem [thread:$0]  %s373, 128, %s375, %s363
        $region48: #{tpu_custom_call.1} parent=31 // pred_fallthru
          _
      $region32: #{tpu_custom_call.1} parent=5 // pred_fallthru
        _
      %p378 = scmp.le.s32.totalorder 1, %s31
      %p379 = scmp.lt.s32.totalorder %s31, 3
      %p380 = pnand %p378, %p379
      %p381 = pneg %p380
      // Predicated region
      $region49: #{tpu_custom_call.1} parent=5 // pred_check
        _
      $region50: #{tpu_custom_call.1} parent=5 // pred_check_branch
        %383 = sbr.rel (%p380) target = $region52
      $region51: #{tpu_custom_call.1} parent=5 // pred_region
        %s384 = ssub.s32 %s31, 1
        %s385 = sand.u32 %s44, 1
        %s386 = scalar_lea.sflag [#allocation3], %s385
        %s387 = sand.u32 %s44, 1
        %s388 = smul.addr %s387, 8
        %s389 = scalar_lea.vmem [#allocation2], %s388
        // Predicated region
        $region53: #{tpu_custom_call.1} parent=51 // pred_check
          %p390 = pneg %p57
        $region54: #{tpu_custom_call.1} parent=51 // pred_check_branch
          %392 = sbr.rel (%p390) target = $region56
        $region55: #{tpu_custom_call.1} parent=51 // pred_region
          %394 = dma.done %s386, 128
        $region56: #{tpu_custom_call.1} parent=51 // pred_fallthru
          _
        %s395 = sand.u32 %s36, 1
        %s396 = scalar_lea.sflag [#allocation6], %s395
        %s397 = sand.u32 %s70, 1
        %s398 = smul.addr %s397, 8
        %s399 = scalar_lea.vmem [#allocation5], %s398
        // Predicated region
        $region57: #{tpu_custom_call.1} parent=51 // pred_check
          %p400 = pneg %p83
        $region58: #{tpu_custom_call.1} parent=51 // pred_check_branch
          %402 = sbr.rel (%p400) target = $region60
        $region59: #{tpu_custom_call.1} parent=51 // pred_region
          %404 = dma.done %s396, 128
        $region60: #{tpu_custom_call.1} parent=51 // pred_fallthru
          _
        %s405 = sand.u32 %s36, 1
        %s406 = scalar_lea.sflag [#allocation6], %s405
        %s407 = sand.u32 %s96, 1
        %s408 = smul.addr %s407, 8
        %s409 = scalar_lea.vmem [#allocation7], %s408
        // Predicated region
        $region61: #{tpu_custom_call.1} parent=51 // pred_check
          %p410 = pneg %p109
        $region62: #{tpu_custom_call.1} parent=51 // pred_check_branch
          %412 = sbr.rel (%p410) target = $region64
        $region63: #{tpu_custom_call.1} parent=51 // pred_region
          %414 = dma.done %s406, 128
        $region64: #{tpu_custom_call.1} parent=51 // pred_fallthru
          _
        %s415 = sand.u32 %s122, 1
        %s416 = scalar_lea.sflag [#allocation9], %s415
        %s417 = sand.u32 %s122, 1
        %s418 = smul.addr %s417, 8
        %s419 = scalar_lea.vmem [#allocation8], %s418
        // Predicated region
        $region65: #{tpu_custom_call.1} parent=51 // pred_check
          %p420 = pneg %p135
        $region66: #{tpu_custom_call.1} parent=51 // pred_check_branch
          %422 = sbr.rel (%p420) target = $region68
        $region67: #{tpu_custom_call.1} parent=51 // pred_region
          %424 = dma.done %s416, 128
        $region68: #{tpu_custom_call.1} parent=51 // pred_fallthru
          _
        %s425 = sand.u32 %s44, 1
        %s426 = scalar_lea.sflag [#allocation3], %s425
        %s427 = sand.u32 %s44, 1
        %s428 = smul.addr %s427, 8
        %s429 = scalar_lea.vmem [#allocation2], %s428
        %p430 = pneg %p57
        %p431 = pneg %p54
        %s432 = sand.u32 %s36, 1
        %s433 = scalar_lea.sflag [#allocation6], %s432
        %s434 = sand.u32 %s70, 1
        %s435 = smul.addr %s434, 8
        %s436 = scalar_lea.vmem [#allocation5], %s435
        %p437 = pneg %p83
        %p438 = pneg %p80
        %s439 = sand.u32 %s36, 1
        %s440 = scalar_lea.sflag [#allocation6], %s439
        %s441 = sand.u32 %s96, 1
        %s442 = smul.addr %s441, 8
        %s443 = scalar_lea.vmem [#allocation7], %s442
        %p444 = pneg %p109
        %p445 = pneg %p106
        %s446 = sand.u32 %s122, 1
        %s447 = scalar_lea.sflag [#allocation9], %s446
        %s448 = sand.u32 %s122, 1
        %s449 = smul.addr %s448, 8
        %s450 = scalar_lea.vmem [#allocation8], %s449
        %p451 = pneg %p135
        %p452 = pneg %p132
        %p453 = pneg %p156
        %p454 = pneg %p153
        %p455 = pneg %p177
        %p456 = pneg %p174
        %p457 = pneg %p198
        %p458 = pneg %p195
        %p459 = pneg %p219
        %p460 = pneg %p216
        %p461 = pneg %p245
        %p462 = pneg %p242
        %s463 = sand.u32 %s232, 1
        %s464 = scalar_lea.sflag [#allocation4], %s463
        %s465 = sand.u32 %s232, 1
        %s466 = smul.addr %s465, 8
        %s467 = scalar_lea.vmem [#allocation10], %s466
        %p468 = pneg %p271
        %p469 = pneg %p268
        %s470 = sand.u32 %s258, 1
        %s471 = scalar_lea.sflag [#allocation12], %s470
        %s472 = sand.u32 %s258, 1
        %s473 = smul.addr %s472, 64
        %s474 = scalar_lea.vmem [#allocation11], %s473
        %v476 = vld [vmem:[%s389] sm:$0xff]
        %v477 = vld [vmem:[%s399] sm:$0xff]
        %v478 = vld [vmem:[%s409] sm:$0xff]
        %v479 = vld [vmem:[%s419] sm:$0xff]
        %v480 = vpack.c.bf16 %v476, %v476
        %v481 = vpack.c.bf16 %v477, %v477
        %v482 = vpack.c.bf16 %v478, %v478
        %v483 = vld [vmem:[%s4] sm:$0xf]
        %v484 = vld [vmem:[%s4 + $0x4] sm:$0xf]
        %v485 = vld [vmem:[%s4 + $0x8] sm:$0xf]
        %v486 = vld [vmem:[%s4 + $0xc] sm:$0xf]
        %v487 = vld [vmem:[%s4 + $0x10] sm:$0xf]
        %v488 = vld [vmem:[%s4 + $0x14] sm:$0xf]
        %v489 = vld [vmem:[%s4 + $0x18] sm:$0xf]
        %v490 = vld [vmem:[%s4 + $0x1c] sm:$0xf]
        %v491 = vld [vmem:[%s4 + $0x20] sm:$0xf]
        %v492 = vld [vmem:[%s4 + $0x24] sm:$0xf]
        %v493 = vld [vmem:[%s4 + $0x28] sm:$0xf]
        %v494 = vld [vmem:[%s4 + $0x2c] sm:$0xf]
        %v495 = vld [vmem:[%s4 + $0x30] sm:$0xf]
        %v496 = vld [vmem:[%s4 + $0x34] sm:$0xf]
        %v497 = vld [vmem:[%s4 + $0x38] sm:$0xf]
        %v498 = vld [vmem:[%s4 + $0x3c] sm:$0xf]
        %v499 = vld [vmem:[%s4 + $0x40] sm:$0xf]
        %v500 = vld [vmem:[%s4 + $0x44] sm:$0xf]
        %v501 = vld [vmem:[%s4 + $0x48] sm:$0xf]
        %v502 = vld [vmem:[%s4 + $0x4c] sm:$0xf]
        %v503 = vld [vmem:[%s4 + $0x50] sm:$0xf]
        %v504 = vld [vmem:[%s4 + $0x54] sm:$0xf]
        %v505 = vld [vmem:[%s4 + $0x58] sm:$0xf]
        %v506 = vld [vmem:[%s4 + $0x5c] sm:$0xf]
        %v507 = vld [vmem:[%s4 + $0x60] sm:$0xf]
        %v508 = vld [vmem:[%s4 + $0x64] sm:$0xf]
        %v509 = vld [vmem:[%s4 + $0x68] sm:$0xf]
        %v510 = vld [vmem:[%s4 + $0x6c] sm:$0xf]
        %v511 = vld [vmem:[%s4 + $0x70] sm:$0xf]
        %v512 = vld [vmem:[%s4 + $0x74] sm:$0xf]
        %v513 = vld [vmem:[%s4 + $0x78] sm:$0xf]
        %v514 = vld [vmem:[%s4 + $0x7c] sm:$0xf]
        %v519 = vunpack.c.l.b16 %v483
        %v520 = vunpack.c.l.b16 %v484
        %v521 = vunpack.c.l.b16 %v485
        %v522 = vunpack.c.l.b16 %v486
        %v523 = vpack.c.b16 %v520, %v519
        %v524 = vpack.c.b16 %v522, %v521
        %vm527 = vcmask 261120
        %v529 = vsel %vm527, %v480, 0
        %531 = vmatpush.bf16.msra.mxu0 0
        %532 = vmatpush.bf16.msra.mxu0 0
        %533 = vmatpush.bf16.msra.mxu0 0
        %534 = vmatpush.bf16.msra.mxu0 0
        %535 = vmatpush.bf16.msra.mxu0 0
        %536 = vmatpush.bf16.msra.mxu0 0
        %537 = vmatpush.bf16.msra.mxu0 %v524
        %538 = vmatpush.bf16.msra.mxu0 %v523
        %539 = vmatmul.bf16.gmra.mxu0 %v529
        %v540 = vpop.f32.mrf.mxu0
        %v541 = vadd.f32 0.0, %v540
        %v542 = vpop.f32.mrf.mxu0
        %543 = vdwg.mxu0
        %v548 = vunpack.c.l.b16 %v487
        %v549 = vunpack.c.l.b16 %v488
        %v550 = vunpack.c.l.b16 %v489
        %v551 = vunpack.c.l.b16 %v490
        %v552 = vpack.c.b16 %v549, %v548
        %v553 = vpack.c.b16 %v551, %v550
        %556 = vmatpush.bf16.msra.mxu0 0
        %557 = vmatpush.bf16.msra.mxu0 0
        %558 = vmatpush.bf16.msra.mxu0 0
        %559 = vmatpush.bf16.msra.mxu0 0
        %560 = vmatpush.bf16.msra.mxu0 0
        %561 = vmatpush.bf16.msra.mxu0 0
        %562 = vmatpush.bf16.msra.mxu0 %v553
        %563 = vmatpush.bf16.msra.mxu0 %v552
        %564 = vmatmul.bf16.gmra.mxu0 %v529
        %v565 = vpop.f32.mrf.mxu0
        %v566 = vadd.f32 0.0, %v565
        %v567 = vpop.f32.mrf.mxu0
        %568 = vdwg.mxu0
        %v573 = vunpack.c.l.b16 %v491
        %v574 = vunpack.c.l.b16 %v492
        %v575 = vunpack.c.l.b16 %v493
        %v576 = vunpack.c.l.b16 %v494
        %v577 = vpack.c.b16 %v574, %v573
        %v578 = vpack.c.b16 %v576, %v575
        %581 = vmatpush.bf16.msra.mxu0 0
        %582 = vmatpush.bf16.msra.mxu0 0
        %583 = vmatpush.bf16.msra.mxu0 0
        %584 = vmatpush.bf16.msra.mxu0 0
        %585 = vmatpush.bf16.msra.mxu0 0
        %586 = vmatpush.bf16.msra.mxu0 0
        %587 = vmatpush.bf16.msra.mxu0 %v578
        %588 = vmatpush.bf16.msra.mxu0 %v577
        %589 = vmatmul.bf16.gmra.mxu0 %v529
        %v590 = vpop.f32.mrf.mxu0
        %v591 = vadd.f32 0.0, %v590
        %v592 = vpop.f32.mrf.mxu0
        %593 = vdwg.mxu0
        %v598 = vunpack.c.l.b16 %v495
        %v599 = vunpack.c.l.b16 %v496
        %v600 = vunpack.c.l.b16 %v497
        %v601 = vunpack.c.l.b16 %v498
        %v602 = vpack.c.b16 %v599, %v598
        %v603 = vpack.c.b16 %v601, %v600
        %606 = vmatpush.bf16.msra.mxu0 0
        %607 = vmatpush.bf16.msra.mxu0 0
        %608 = vmatpush.bf16.msra.mxu0 0
        %609 = vmatpush.bf16.msra.mxu0 0
        %610 = vmatpush.bf16.msra.mxu0 0
        %611 = vmatpush.bf16.msra.mxu0 0
        %612 = vmatpush.bf16.msra.mxu0 %v603
        %613 = vmatpush.bf16.msra.mxu0 %v602
        %614 = vmatmul.bf16.gmra.mxu0 %v529
        %v615 = vpop.f32.mrf.mxu0
        %v616 = vadd.f32 0.0, %v615
        %v617 = vpop.f32.mrf.mxu0
        %618 = vdwg.mxu0
        %v623 = vunpack.c.l.b16 %v499
        %v624 = vunpack.c.l.b16 %v500
        %v625 = vunpack.c.l.b16 %v501
        %v626 = vunpack.c.l.b16 %v502
        %v627 = vpack.c.b16 %v624, %v623
        %v628 = vpack.c.b16 %v626, %v625
        %631 = vmatpush.bf16.msra.mxu0 0
        %632 = vmatpush.bf16.msra.mxu0 0
        %633 = vmatpush.bf16.msra.mxu0 0
        %634 = vmatpush.bf16.msra.mxu0 0
        %635 = vmatpush.bf16.msra.mxu0 0
        %636 = vmatpush.bf16.msra.mxu0 0
        %637 = vmatpush.bf16.msra.mxu0 %v628
        %638 = vmatpush.bf16.msra.mxu0 %v627
        %639 = vmatmul.bf16.gmra.mxu0 %v529
        %v640 = vpop.f32.mrf.mxu0
        %v641 = vadd.f32 0.0, %v640
        %v642 = vpop.f32.mrf.mxu0
        %643 = vdwg.mxu0
        %v648 = vunpack.c.l.b16 %v503
        %v649 = vunpack.c.l.b16 %v504
        %v650 = vunpack.c.l.b16 %v505
        %v651 = vunpack.c.l.b16 %v506
        %v652 = vpack.c.b16 %v649, %v648
        %v653 = vpack.c.b16 %v651, %v650
        %656 = vmatpush.bf16.msra.mxu0 0
        %657 = vmatpush.bf16.msra.mxu0 0
        %658 = vmatpush.bf16.msra.mxu0 0
        %659 = vmatpush.bf16.msra.mxu0 0
        %660 = vmatpush.bf16.msra.mxu0 0
        %661 = vmatpush.bf16.msra.mxu0 0
        %662 = vmatpush.bf16.msra.mxu0 %v653
        %663 = vmatpush.bf16.msra.mxu0 %v652
        %664 = vmatmul.bf16.gmra.mxu0 %v529
        %v665 = vpop.f32.mrf.mxu0
        %v666 = vadd.f32 0.0, %v665
        %v667 = vpop.f32.mrf.mxu0
        %668 = vdwg.mxu0
        %v673 = vunpack.c.l.b16 %v507
        %v674 = vunpack.c.l.b16 %v508
        %v675 = vunpack.c.l.b16 %v509
        %v676 = vunpack.c.l.b16 %v510
        %v677 = vpack.c.b16 %v674, %v673
        %v678 = vpack.c.b16 %v676, %v675
        %681 = vmatpush.bf16.msra.mxu0 0
        %682 = vmatpush.bf16.msra.mxu0 0
        %683 = vmatpush.bf16.msra.mxu0 0
        %684 = vmatpush.bf16.msra.mxu0 0
        %685 = vmatpush.bf16.msra.mxu0 0
        %686 = vmatpush.bf16.msra.mxu0 0
        %687 = vmatpush.bf16.msra.mxu0 %v678
        %688 = vmatpush.bf16.msra.mxu0 %v677
        %689 = vmatmul.bf16.gmra.mxu0 %v529
        %v690 = vpop.f32.mrf.mxu0
        %v691 = vadd.f32 0.0, %v690
        %v692 = vpop.f32.mrf.mxu0
        %693 = vdwg.mxu0
        %v698 = vunpack.c.l.b16 %v511
        %v699 = vunpack.c.l.b16 %v512
        %v700 = vunpack.c.l.b16 %v513
        %v701 = vunpack.c.l.b16 %v514
        %v702 = vpack.c.b16 %v699, %v698
        %v703 = vpack.c.b16 %v701, %v700
        %706 = vmatpush.bf16.msra.mxu0 0
        %707 = vmatpush.bf16.msra.mxu0 0
        %708 = vmatpush.bf16.msra.mxu0 0
        %709 = vmatpush.bf16.msra.mxu0 0
        %710 = vmatpush.bf16.msra.mxu0 0
        %711 = vmatpush.bf16.msra.mxu0 0
        %712 = vmatpush.bf16.msra.mxu0 %v703
        %713 = vmatpush.bf16.msra.mxu0 %v702
        %714 = vmatmul.bf16.gmra.mxu0 %v529
        %v715 = vpop.f32.mrf.mxu0
        %v716 = vadd.f32 0.0, %v715
        %v717 = vpop.f32.mrf.mxu0
        %718 = vdwg.mxu0
        %v719 = vld [vmem:[%s5] sm:$0xf]
        %v720 = vld [vmem:[%s5 + $0x4] sm:$0xf]
        %v721 = vld [vmem:[%s5 + $0x8] sm:$0xf]
        %v722 = vld [vmem:[%s5 + $0xc] sm:$0xf]
        %v723 = vld [vmem:[%s5 + $0x10] sm:$0xf]
        %v724 = vld [vmem:[%s5 + $0x14] sm:$0xf]
        %v725 = vld [vmem:[%s5 + $0x18] sm:$0xf]
        %v726 = vld [vmem:[%s5 + $0x1c] sm:$0xf]
        %v727 = vld [vmem:[%s5 + $0x20] sm:$0xf]
        %v728 = vld [vmem:[%s5 + $0x24] sm:$0xf]
        %v729 = vld [vmem:[%s5 + $0x28] sm:$0xf]
        %v730 = vld [vmem:[%s5 + $0x2c] sm:$0xf]
        %v731 = vld [vmem:[%s5 + $0x30] sm:$0xf]
        %v732 = vld [vmem:[%s5 + $0x34] sm:$0xf]
        %v733 = vld [vmem:[%s5 + $0x38] sm:$0xf]
        %v734 = vld [vmem:[%s5 + $0x3c] sm:$0xf]
        %v735 = vld [vmem:[%s5 + $0x40] sm:$0xf]
        %v736 = vld [vmem:[%s5 + $0x44] sm:$0xf]
        %v737 = vld [vmem:[%s5 + $0x48] sm:$0xf]
        %v738 = vld [vmem:[%s5 + $0x4c] sm:$0xf]
        %v739 = vld [vmem:[%s5 + $0x50] sm:$0xf]
        %v740 = vld [vmem:[%s5 + $0x54] sm:$0xf]
        %v741 = vld [vmem:[%s5 + $0x58] sm:$0xf]
        %v742 = vld [vmem:[%s5 + $0x5c] sm:$0xf]
        %v743 = vld [vmem:[%s5 + $0x60] sm:$0xf]
        %v744 = vld [vmem:[%s5 + $0x64] sm:$0xf]
        %v745 = vld [vmem:[%s5 + $0x68] sm:$0xf]
        %v746 = vld [vmem:[%s5 + $0x6c] sm:$0xf]
        %v747 = vld [vmem:[%s5 + $0x70] sm:$0xf]
        %v748 = vld [vmem:[%s5 + $0x74] sm:$0xf]
        %v749 = vld [vmem:[%s5 + $0x78] sm:$0xf]
        %v750 = vld [vmem:[%s5 + $0x7c] sm:$0xf]
        %v755 = vunpack.c.l.b16 %v719
        %v756 = vunpack.c.l.b16 %v720
        %v757 = vunpack.c.l.b16 %v721
        %v758 = vunpack.c.l.b16 %v722
        %v759 = vpack.c.b16 %v756, %v755
        %v760 = vpack.c.b16 %v758, %v757
        %v764 = vsel %vm527, %v481, 0
        %766 = vmatpush.bf16.msra.mxu0 0
        %767 = vmatpush.bf16.msra.mxu0 0
        %768 = vmatpush.bf16.msra.mxu0 0
        %769 = vmatpush.bf16.msra.mxu0 0
        %770 = vmatpush.bf16.msra.mxu0 0
        %771 = vmatpush.bf16.msra.mxu0 0
        %772 = vmatpush.bf16.msra.mxu0 %v760
        %773 = vmatpush.bf16.msra.mxu0 %v759
        %774 = vmatmul.bf16.gmra.mxu0 %v764
        %v775 = vpop.f32.mrf.mxu0
        %v776 = vadd.f32 0.0, %v775
        %v777 = vpop.f32.mrf.mxu0
        %778 = vdwg.mxu0
        %v783 = vunpack.c.l.b16 %v723
        %v784 = vunpack.c.l.b16 %v724
        %v785 = vunpack.c.l.b16 %v725
        %v786 = vunpack.c.l.b16 %v726
        %v787 = vpack.c.b16 %v784, %v783
        %v788 = vpack.c.b16 %v786, %v785
        %791 = vmatpush.bf16.msra.mxu0 0
        %792 = vmatpush.bf16.msra.mxu0 0
        %793 = vmatpush.bf16.msra.mxu0 0
        %794 = vmatpush.bf16.msra.mxu0 0
        %795 = vmatpush.bf16.msra.mxu0 0
        %796 = vmatpush.bf16.msra.mxu0 0
        %797 = vmatpush.bf16.msra.mxu0 %v788
        %798 = vmatpush.bf16.msra.mxu0 %v787
        %799 = vmatmul.bf16.gmra.mxu0 %v764
        %v800 = vpop.f32.mrf.mxu0
        %v801 = vadd.f32 0.0, %v800
        %v802 = vpop.f32.mrf.mxu0
        %803 = vdwg.mxu0
        %v808 = vunpack.c.l.b16 %v727
        %v809 = vunpack.c.l.b16 %v728
        %v810 = vunpack.c.l.b16 %v729
        %v811 = vunpack.c.l.b16 %v730
        %v812 = vpack.c.b16 %v809, %v808
        %v813 = vpack.c.b16 %v811, %v810
        %816 = vmatpush.bf16.msra.mxu0 0
        %817 = vmatpush.bf16.msra.mxu0 0
        %818 = vmatpush.bf16.msra.mxu0 0
        %819 = vmatpush.bf16.msra.mxu0 0
        %820 = vmatpush.bf16.msra.mxu0 0
        %821 = vmatpush.bf16.msra.mxu0 0
        %822 = vmatpush.bf16.msra.mxu0 %v813
        %823 = vmatpush.bf16.msra.mxu0 %v812
        %824 = vmatmul.bf16.gmra.mxu0 %v764
        %v825 = vpop.f32.mrf.mxu0
        %v826 = vadd.f32 0.0, %v825
        %v827 = vpop.f32.mrf.mxu0
        %828 = vdwg.mxu0
        %v833 = vunpack.c.l.b16 %v731
        %v834 = vunpack.c.l.b16 %v732
        %v835 = vunpack.c.l.b16 %v733
        %v836 = vunpack.c.l.b16 %v734
        %v837 = vpack.c.b16 %v834, %v833
        %v838 = vpack.c.b16 %v836, %v835
        %841 = vmatpush.bf16.msra.mxu0 0
        %842 = vmatpush.bf16.msra.mxu0 0
        %843 = vmatpush.bf16.msra.mxu0 0
        %844 = vmatpush.bf16.msra.mxu0 0
        %845 = vmatpush.bf16.msra.mxu0 0
        %846 = vmatpush.bf16.msra.mxu0 0
        %847 = vmatpush.bf16.msra.mxu0 %v838
        %848 = vmatpush.bf16.msra.mxu0 %v837
        %849 = vmatmul.bf16.gmra.mxu0 %v764
        %v850 = vpop.f32.mrf.mxu0
        %v851 = vadd.f32 0.0, %v850
        %v852 = vpop.f32.mrf.mxu0
        %853 = vdwg.mxu0
        %v858 = vunpack.c.l.b16 %v735
        %v859 = vunpack.c.l.b16 %v736
        %v860 = vunpack.c.l.b16 %v737
        %v861 = vunpack.c.l.b16 %v738
        %v862 = vpack.c.b16 %v859, %v858
        %v863 = vpack.c.b16 %v861, %v860
        %866 = vmatpush.bf16.msra.mxu0 0
        %867 = vmatpush.bf16.msra.mxu0 0
        %868 = vmatpush.bf16.msra.mxu0 0
        %869 = vmatpush.bf16.msra.mxu0 0
        %870 = vmatpush.bf16.msra.mxu0 0
        %871 = vmatpush.bf16.msra.mxu0 0
        %872 = vmatpush.bf16.msra.mxu0 %v863
        %873 = vmatpush.bf16.msra.mxu0 %v862
        %874 = vmatmul.bf16.gmra.mxu0 %v764
        %v875 = vpop.f32.mrf.mxu0
        %v876 = vadd.f32 0.0, %v875
        %v877 = vpop.f32.mrf.mxu0
        %878 = vdwg.mxu0
        %v883 = vunpack.c.l.b16 %v739
        %v884 = vunpack.c.l.b16 %v740
        %v885 = vunpack.c.l.b16 %v741
        %v886 = vunpack.c.l.b16 %v742
        %v887 = vpack.c.b16 %v884, %v883
        %v888 = vpack.c.b16 %v886, %v885
        %891 = vmatpush.bf16.msra.mxu0 0
        %892 = vmatpush.bf16.msra.mxu0 0
        %893 = vmatpush.bf16.msra.mxu0 0
        %894 = vmatpush.bf16.msra.mxu0 0
        %895 = vmatpush.bf16.msra.mxu0 0
        %896 = vmatpush.bf16.msra.mxu0 0
        %897 = vmatpush.bf16.msra.mxu0 %v888
        %898 = vmatpush.bf16.msra.mxu0 %v887
        %899 = vmatmul.bf16.gmra.mxu0 %v764
        %v900 = vpop.f32.mrf.mxu0
        %v901 = vadd.f32 0.0, %v900
        %v902 = vpop.f32.mrf.mxu0
        %903 = vdwg.mxu0
        %v908 = vunpack.c.l.b16 %v743
        %v909 = vunpack.c.l.b16 %v744
        %v910 = vunpack.c.l.b16 %v745
        %v911 = vunpack.c.l.b16 %v746
        %v912 = vpack.c.b16 %v909, %v908
        %v913 = vpack.c.b16 %v911, %v910
        %916 = vmatpush.bf16.msra.mxu0 0
        %917 = vmatpush.bf16.msra.mxu0 0
        %918 = vmatpush.bf16.msra.mxu0 0
        %919 = vmatpush.bf16.msra.mxu0 0
        %920 = vmatpush.bf16.msra.mxu0 0
        %921 = vmatpush.bf16.msra.mxu0 0
        %922 = vmatpush.bf16.msra.mxu0 %v913
        %923 = vmatpush.bf16.msra.mxu0 %v912
        %924 = vmatmul.bf16.gmra.mxu0 %v764
        %v925 = vpop.f32.mrf.mxu0
        %v926 = vadd.f32 0.0, %v925
        %v927 = vpop.f32.mrf.mxu0
        %928 = vdwg.mxu0
        %v933 = vunpack.c.l.b16 %v747
        %v934 = vunpack.c.l.b16 %v748
        %v935 = vunpack.c.l.b16 %v749
        %v936 = vunpack.c.l.b16 %v750
        %v937 = vpack.c.b16 %v934, %v933
        %v938 = vpack.c.b16 %v936, %v935
        %941 = vmatpush.bf16.msra.mxu0 0
        %942 = vmatpush.bf16.msra.mxu0 0
        %943 = vmatpush.bf16.msra.mxu0 0
        %944 = vmatpush.bf16.msra.mxu0 0
        %945 = vmatpush.bf16.msra.mxu0 0
        %946 = vmatpush.bf16.msra.mxu0 0
        %947 = vmatpush.bf16.msra.mxu0 %v938
        %948 = vmatpush.bf16.msra.mxu0 %v937
        %949 = vmatmul.bf16.gmra.mxu0 %v764
        %v950 = vpop.f32.mrf.mxu0
        %v951 = vadd.f32 0.0, %v950
        %v952 = vpop.f32.mrf.mxu0
        %953 = vdwg.mxu0
        %v954 = vld [vmem:[%s6] sm:$0xf]
        %v955 = vld [vmem:[%s6 + $0x4] sm:$0xf]
        %v956 = vld [vmem:[%s6 + $0x8] sm:$0xf]
        %v957 = vld [vmem:[%s6 + $0xc] sm:$0xf]
        %v958 = vld [vmem:[%s6 + $0x10] sm:$0xf]
        %v959 = vld [vmem:[%s6 + $0x14] sm:$0xf]
        %v960 = vld [vmem:[%s6 + $0x18] sm:$0xf]
        %v961 = vld [vmem:[%s6 + $0x1c] sm:$0xf]
        %v962 = vld [vmem:[%s6 + $0x20] sm:$0xf]
        %v963 = vld [vmem:[%s6 + $0x24] sm:$0xf]
        %v964 = vld [vmem:[%s6 + $0x28] sm:$0xf]
        %v965 = vld [vmem:[%s6 + $0x2c] sm:$0xf]
        %v966 = vld [vmem:[%s6 + $0x30] sm:$0xf]
        %v967 = vld [vmem:[%s6 + $0x34] sm:$0xf]
        %v968 = vld [vmem:[%s6 + $0x38] sm:$0xf]
        %v969 = vld [vmem:[%s6 + $0x3c] sm:$0xf]
        %v970 = vld [vmem:[%s6 + $0x40] sm:$0xf]
        %v971 = vld [vmem:[%s6 + $0x44] sm:$0xf]
        %v972 = vld [vmem:[%s6 + $0x48] sm:$0xf]
        %v973 = vld [vmem:[%s6 + $0x4c] sm:$0xf]
        %v974 = vld [vmem:[%s6 + $0x50] sm:$0xf]
        %v975 = vld [vmem:[%s6 + $0x54] sm:$0xf]
        %v976 = vld [vmem:[%s6 + $0x58] sm:$0xf]
        %v977 = vld [vmem:[%s6 + $0x5c] sm:$0xf]
        %v978 = vld [vmem:[%s6 + $0x60] sm:$0xf]
        %v979 = vld [vmem:[%s6 + $0x64] sm:$0xf]
        %v980 = vld [vmem:[%s6 + $0x68] sm:$0xf]
        %v981 = vld [vmem:[%s6 + $0x6c] sm:$0xf]
        %v982 = vld [vmem:[%s6 + $0x70] sm:$0xf]
        %v983 = vld [vmem:[%s6 + $0x74] sm:$0xf]
        %v984 = vld [vmem:[%s6 + $0x78] sm:$0xf]
        %v985 = vld [vmem:[%s6 + $0x7c] sm:$0xf]
        %v990 = vunpack.c.l.b16 %v954
        %v991 = vunpack.c.l.b16 %v955
        %v992 = vunpack.c.l.b16 %v956
        %v993 = vunpack.c.l.b16 %v957
        %v994 = vpack.c.b16 %v991, %v990
        %v995 = vpack.c.b16 %v993, %v992
        %v999 = vsel %vm527, %v482, 0
        %1001 = vmatpush.bf16.msra.mxu0 0
        %1002 = vmatpush.bf16.msra.mxu0 0
        %1003 = vmatpush.bf16.msra.mxu0 0
        %1004 = vmatpush.bf16.msra.mxu0 0
        %1005 = vmatpush.bf16.msra.mxu0 0
        %1006 = vmatpush.bf16.msra.mxu0 0
        %1007 = vmatpush.bf16.msra.mxu0 %v995
        %1008 = vmatpush.bf16.msra.mxu0 %v994
        %1009 = vmatmul.bf16.gmra.mxu0 %v999
        %v1010 = vpop.f32.mrf.mxu0
        %v1011 = vadd.f32 0.0, %v1010
        %v1012 = vpop.f32.mrf.mxu0
        %1013 = vdwg.mxu0
        %v1018 = vunpack.c.l.b16 %v958
        %v1019 = vunpack.c.l.b16 %v959
        %v1020 = vunpack.c.l.b16 %v960
        %v1021 = vunpack.c.l.b16 %v961
        %v1022 = vpack.c.b16 %v1019, %v1018
        %v1023 = vpack.c.b16 %v1021, %v1020
        %1026 = vmatpush.bf16.msra.mxu0 0
        %1027 = vmatpush.bf16.msra.mxu0 0
        %1028 = vmatpush.bf16.msra.mxu0 0
        %1029 = vmatpush.bf16.msra.mxu0 0
        %1030 = vmatpush.bf16.msra.mxu0 0
        %1031 = vmatpush.bf16.msra.mxu0 0
        %1032 = vmatpush.bf16.msra.mxu0 %v1023
        %1033 = vmatpush.bf16.msra.mxu0 %v1022
        %1034 = vmatmul.bf16.gmra.mxu0 %v999
        %v1035 = vpop.f32.mrf.mxu0
        %v1036 = vadd.f32 0.0, %v1035
        %v1037 = vpop.f32.mrf.mxu0
        %1038 = vdwg.mxu0
        %v1043 = vunpack.c.l.b16 %v962
        %v1044 = vunpack.c.l.b16 %v963
        %v1045 = vunpack.c.l.b16 %v964
        %v1046 = vunpack.c.l.b16 %v965
        %v1047 = vpack.c.b16 %v1044, %v1043
        %v1048 = vpack.c.b16 %v1046, %v1045
        %1051 = vmatpush.bf16.msra.mxu0 0
        %1052 = vmatpush.bf16.msra.mxu0 0
        %1053 = vmatpush.bf16.msra.mxu0 0
        %1054 = vmatpush.bf16.msra.mxu0 0
        %1055 = vmatpush.bf16.msra.mxu0 0
        %1056 = vmatpush.bf16.msra.mxu0 0
        %1057 = vmatpush.bf16.msra.mxu0 %v1048
        %1058 = vmatpush.bf16.msra.mxu0 %v1047
        %1059 = vmatmul.bf16.gmra.mxu0 %v999
        %v1060 = vpop.f32.mrf.mxu0
        %v1061 = vadd.f32 0.0, %v1060
        %v1062 = vpop.f32.mrf.mxu0
        %1063 = vdwg.mxu0
        %v1068 = vunpack.c.l.b16 %v966
        %v1069 = vunpack.c.l.b16 %v967
        %v1070 = vunpack.c.l.b16 %v968
        %v1071 = vunpack.c.l.b16 %v969
        %v1072 = vpack.c.b16 %v1069, %v1068
        %v1073 = vpack.c.b16 %v1071, %v1070
        %1076 = vmatpush.bf16.msra.mxu0 0
        %1077 = vmatpush.bf16.msra.mxu0 0
        %1078 = vmatpush.bf16.msra.mxu0 0
        %1079 = vmatpush.bf16.msra.mxu0 0
        %1080 = vmatpush.bf16.msra.mxu0 0
        %1081 = vmatpush.bf16.msra.mxu0 0
        %1082 = vmatpush.bf16.msra.mxu0 %v1073
        %1083 = vmatpush.bf16.msra.mxu0 %v1072
        %1084 = vmatmul.bf16.gmra.mxu0 %v999
        %v1085 = vpop.f32.mrf.mxu0
        %v1086 = vadd.f32 0.0, %v1085
        %v1087 = vpop.f32.mrf.mxu0
        %1088 = vdwg.mxu0
        %v1093 = vunpack.c.l.b16 %v970
        %v1094 = vunpack.c.l.b16 %v971
        %v1095 = vunpack.c.l.b16 %v972
        %v1096 = vunpack.c.l.b16 %v973
        %v1097 = vpack.c.b16 %v1094, %v1093
        %v1098 = vpack.c.b16 %v1096, %v1095
        %1101 = vmatpush.bf16.msra.mxu0 0
        %1102 = vmatpush.bf16.msra.mxu0 0
        %1103 = vmatpush.bf16.msra.mxu0 0
        %1104 = vmatpush.bf16.msra.mxu0 0
        %1105 = vmatpush.bf16.msra.mxu0 0
        %1106 = vmatpush.bf16.msra.mxu0 0
        %1107 = vmatpush.bf16.msra.mxu0 %v1098
        %1108 = vmatpush.bf16.msra.mxu0 %v1097
        %1109 = vmatmul.bf16.gmra.mxu0 %v999
        %v1110 = vpop.f32.mrf.mxu0
        %v1111 = vadd.f32 0.0, %v1110
        %v1112 = vpop.f32.mrf.mxu0
        %1113 = vdwg.mxu0
        %v1118 = vunpack.c.l.b16 %v974
        %v1119 = vunpack.c.l.b16 %v975
        %v1120 = vunpack.c.l.b16 %v976
        %v1121 = vunpack.c.l.b16 %v977
        %v1122 = vpack.c.b16 %v1119, %v1118
        %v1123 = vpack.c.b16 %v1121, %v1120
        %1126 = vmatpush.bf16.msra.mxu0 0
        %1127 = vmatpush.bf16.msra.mxu0 0
        %1128 = vmatpush.bf16.msra.mxu0 0
        %1129 = vmatpush.bf16.msra.mxu0 0
        %1130 = vmatpush.bf16.msra.mxu0 0
        %1131 = vmatpush.bf16.msra.mxu0 0
        %1132 = vmatpush.bf16.msra.mxu0 %v1123
        %1133 = vmatpush.bf16.msra.mxu0 %v1122
        %1134 = vmatmul.bf16.gmra.mxu0 %v999
        %v1135 = vpop.f32.mrf.mxu0
        %v1136 = vadd.f32 0.0, %v1135
        %v1137 = vpop.f32.mrf.mxu0
        %1138 = vdwg.mxu0
        %v1143 = vunpack.c.l.b16 %v978
        %v1144 = vunpack.c.l.b16 %v979
        %v1145 = vunpack.c.l.b16 %v980
        %v1146 = vunpack.c.l.b16 %v981
        %v1147 = vpack.c.b16 %v1144, %v1143
        %v1148 = vpack.c.b16 %v1146, %v1145
        %1151 = vmatpush.bf16.msra.mxu0 0
        %1152 = vmatpush.bf16.msra.mxu0 0
        %1153 = vmatpush.bf16.msra.mxu0 0
        %1154 = vmatpush.bf16.msra.mxu0 0
        %1155 = vmatpush.bf16.msra.mxu0 0
        %1156 = vmatpush.bf16.msra.mxu0 0
        %1157 = vmatpush.bf16.msra.mxu0 %v1148
        %1158 = vmatpush.bf16.msra.mxu0 %v1147
        %1159 = vmatmul.bf16.gmra.mxu0 %v999
        %v1160 = vpop.f32.mrf.mxu0
        %v1161 = vadd.f32 0.0, %v1160
        %v1162 = vpop.f32.mrf.mxu0
        %1163 = vdwg.mxu0
        %v1168 = vunpack.c.l.b16 %v982
        %v1169 = vunpack.c.l.b16 %v983
        %v1170 = vunpack.c.l.b16 %v984
        %v1171 = vunpack.c.l.b16 %v985
        %v1172 = vpack.c.b16 %v1169, %v1168
        %v1173 = vpack.c.b16 %v1171, %v1170
        %1176 = vmatpush.bf16.msra.mxu0 0
        %1177 = vmatpush.bf16.msra.mxu0 0
        %1178 = vmatpush.bf16.msra.mxu0 0
        %1179 = vmatpush.bf16.msra.mxu0 0
        %1180 = vmatpush.bf16.msra.mxu0 0
        %1181 = vmatpush.bf16.msra.mxu0 0
        %1182 = vmatpush.bf16.msra.mxu0 %v1173
        %1183 = vmatpush.bf16.msra.mxu0 %v1172
        %1184 = vmatmul.bf16.gmra.mxu0 %v999
        %v1185 = vpop.f32.mrf.mxu0
        %v1186 = vadd.f32 0.0, %v1185
        %v1187 = vpop.f32.mrf.mxu0
        %1188 = vdwg.mxu0
        %v1189 = vpack.c.bf16 %v541, %v541
        %v1190 = vpack.c.bf16 %v566, %v566
        %v1191 = vpack.c.bf16 %v591, %v591
        %v1192 = vpack.c.bf16 %v616, %v616
        %v1193 = vpack.c.bf16 %v641, %v641
        %v1194 = vpack.c.bf16 %v666, %v666
        %v1195 = vpack.c.bf16 %v691, %v691
        %v1196 = vpack.c.bf16 %v716, %v716
        %v1197 = vpack.c.bf16 %v776, %v776
        %v1198 = vpack.c.bf16 %v801, %v801
        %v1199 = vpack.c.bf16 %v826, %v826
        %v1200 = vpack.c.bf16 %v851, %v851
        %v1201 = vpack.c.bf16 %v876, %v876
        %v1202 = vpack.c.bf16 %v901, %v901
        %v1203 = vpack.c.bf16 %v926, %v926
        %v1204 = vpack.c.bf16 %v951, %v951
        %vm1205 = vcmask 523264
        %v1207 = vsel %vm1205, %v1189, 0
        %v1210 = vsel %vm1205, %v1197, 0
        %1212 = vmatpush.bf16.xpose.msra.mxu0 0
        %1213 = vmatpush.bf16.xpose.msra.mxu0 0
        %1214 = vmatpush.bf16.xpose.msra.mxu0 0
        %1215 = vmatpush.bf16.xpose.msra.mxu0 0
        %1216 = vmatpush.bf16.xpose.msra.mxu0 0
        %1217 = vmatpush.bf16.xpose.msra.mxu0 0
        %1218 = vmatpush.bf16.xpose.msra.mxu0 0
        %1219 = vmatpush.bf16.xpose.msra.mxu0 %v1210
        %1220 = vmatmul.bf16.gmra.mxu0 %v1207
        %v1221 = vpop.f32.mrf.mxu0
        %v1222 = vadd.f32 0.0, %v1221
        %v1223 = vpop.f32.mrf.mxu0
        %1224 = vdwg.mxu0
        %v1226 = vsel %vm1205, %v1190, 0
        %v1229 = vsel %vm1205, %v1198, 0
        %1231 = vmatpush.bf16.xpose.msra.mxu0 0
        %1232 = vmatpush.bf16.xpose.msra.mxu0 0
        %1233 = vmatpush.bf16.xpose.msra.mxu0 0
        %1234 = vmatpush.bf16.xpose.msra.mxu0 0
        %1235 = vmatpush.bf16.xpose.msra.mxu0 0
        %1236 = vmatpush.bf16.xpose.msra.mxu0 0
        %1237 = vmatpush.bf16.xpose.msra.mxu0 0
        %1238 = vmatpush.bf16.xpose.msra.mxu0 %v1229
        %1239 = vmatmul.bf16.gmra.mxu0 %v1226
        %v1240 = vpop.f32.mrf.mxu0
        %v1241 = vadd.f32 0.0, %v1240
        %v1242 = vpop.f32.mrf.mxu0
        %1243 = vdwg.mxu0
        %v1245 = vsel %vm1205, %v1191, 0
        %v1248 = vsel %vm1205, %v1199, 0
        %1250 = vmatpush.bf16.xpose.msra.mxu0 0
        %1251 = vmatpush.bf16.xpose.msra.mxu0 0
        %1252 = vmatpush.bf16.xpose.msra.mxu0 0
        %1253 = vmatpush.bf16.xpose.msra.mxu0 0
        %1254 = vmatpush.bf16.xpose.msra.mxu0 0
        %1255 = vmatpush.bf16.xpose.msra.mxu0 0
        %1256 = vmatpush.bf16.xpose.msra.mxu0 0
        %1257 = vmatpush.bf16.xpose.msra.mxu0 %v1248
        %1258 = vmatmul.bf16.gmra.mxu0 %v1245
        %v1259 = vpop.f32.mrf.mxu0
        %v1260 = vadd.f32 0.0, %v1259
        %v1261 = vpop.f32.mrf.mxu0
        %1262 = vdwg.mxu0
        %v1264 = vsel %vm1205, %v1192, 0
        %v1267 = vsel %vm1205, %v1200, 0
        %1269 = vmatpush.bf16.xpose.msra.mxu0 0
        %1270 = vmatpush.bf16.xpose.msra.mxu0 0
        %1271 = vmatpush.bf16.xpose.msra.mxu0 0
        %1272 = vmatpush.bf16.xpose.msra.mxu0 0
        %1273 = vmatpush.bf16.xpose.msra.mxu0 0
        %1274 = vmatpush.bf16.xpose.msra.mxu0 0
        %1275 = vmatpush.bf16.xpose.msra.mxu0 0
        %1276 = vmatpush.bf16.xpose.msra.mxu0 %v1267
        %1277 = vmatmul.bf16.gmra.mxu0 %v1264
        %v1278 = vpop.f32.mrf.mxu0
        %v1279 = vadd.f32 0.0, %v1278
        %v1280 = vpop.f32.mrf.mxu0
        %1281 = vdwg.mxu0
        %v1283 = vsel %vm1205, %v1193, 0
        %v1286 = vsel %vm1205, %v1201, 0
        %1288 = vmatpush.bf16.xpose.msra.mxu0 0
        %1289 = vmatpush.bf16.xpose.msra.mxu0 0
        %1290 = vmatpush.bf16.xpose.msra.mxu0 0
        %1291 = vmatpush.bf16.xpose.msra.mxu0 0
        %1292 = vmatpush.bf16.xpose.msra.mxu0 0
        %1293 = vmatpush.bf16.xpose.msra.mxu0 0
        %1294 = vmatpush.bf16.xpose.msra.mxu0 0
        %1295 = vmatpush.bf16.xpose.msra.mxu0 %v1286
        %1296 = vmatmul.bf16.gmra.mxu0 %v1283
        %v1297 = vpop.f32.mrf.mxu0
        %v1298 = vadd.f32 0.0, %v1297
        %v1299 = vpop.f32.mrf.mxu0
        %1300 = vdwg.mxu0
        %v1302 = vsel %vm1205, %v1194, 0
        %v1305 = vsel %vm1205, %v1202, 0
        %1307 = vmatpush.bf16.xpose.msra.mxu0 0
        %1308 = vmatpush.bf16.xpose.msra.mxu0 0
        %1309 = vmatpush.bf16.xpose.msra.mxu0 0
        %1310 = vmatpush.bf16.xpose.msra.mxu0 0
        %1311 = vmatpush.bf16.xpose.msra.mxu0 0
        %1312 = vmatpush.bf16.xpose.msra.mxu0 0
        %1313 = vmatpush.bf16.xpose.msra.mxu0 0
        %1314 = vmatpush.bf16.xpose.msra.mxu0 %v1305
        %1315 = vmatmul.bf16.gmra.mxu0 %v1302
        %v1316 = vpop.f32.mrf.mxu0
        %v1317 = vadd.f32 0.0, %v1316
        %v1318 = vpop.f32.mrf.mxu0
        %1319 = vdwg.mxu0
        %v1321 = vsel %vm1205, %v1195, 0
        %v1324 = vsel %vm1205, %v1203, 0
        %1326 = vmatpush.bf16.xpose.msra.mxu0 0
        %1327 = vmatpush.bf16.xpose.msra.mxu0 0
        %1328 = vmatpush.bf16.xpose.msra.mxu0 0
        %1329 = vmatpush.bf16.xpose.msra.mxu0 0
        %1330 = vmatpush.bf16.xpose.msra.mxu0 0
        %1331 = vmatpush.bf16.xpose.msra.mxu0 0
        %1332 = vmatpush.bf16.xpose.msra.mxu0 0
        %1333 = vmatpush.bf16.xpose.msra.mxu0 %v1324
        %1334 = vmatmul.bf16.gmra.mxu0 %v1321
        %v1335 = vpop.f32.mrf.mxu0
        %v1336 = vadd.f32 0.0, %v1335
        %v1337 = vpop.f32.mrf.mxu0
        %1338 = vdwg.mxu0
        %v1340 = vsel %vm1205, %v1196, 0
        %v1343 = vsel %vm1205, %v1204, 0
        %1345 = vmatpush.bf16.xpose.msra.mxu0 0
        %1346 = vmatpush.bf16.xpose.msra.mxu0 0
        %1347 = vmatpush.bf16.xpose.msra.mxu0 0
        %1348 = vmatpush.bf16.xpose.msra.mxu0 0
        %1349 = vmatpush.bf16.xpose.msra.mxu0 0
        %1350 = vmatpush.bf16.xpose.msra.mxu0 0
        %1351 = vmatpush.bf16.xpose.msra.mxu0 0
        %1352 = vmatpush.bf16.xpose.msra.mxu0 %v1343
        %1353 = vmatmul.bf16.gmra.mxu0 %v1340
        %v1354 = vpop.f32.mrf.mxu0
        %v1355 = vadd.f32 0.0, %v1354
        %v1356 = vpop.f32.mrf.mxu0
        %1357 = vdwg.mxu0
        %v1358 = vmul.f32 %v1222, 0.125
        %v1359 = vmul.f32 %v1241, 0.125
        %v1360 = vmul.f32 %v1260, 0.125
        %v1361 = vmul.f32 %v1279, 0.125
        %v1362 = vmul.f32 %v1298, 0.125
        %v1363 = vmul.f32 %v1317, 0.125
        %v1364 = vmul.f32 %v1336, 0.125
        %v1365 = vmul.f32 %v1355, 0.125
        %vm1366 = vcmp.ne.f32.partialorder %v479, 0.0
        %v1367 = vsel %vm1366, 1, 0
        %vm1368 = vcmp.eq.s32.totalorder %v1367, 1
        %v1369 = vsel %vm1368, -1e+09, %v1358
        %v1370 = vsel %vm1368, -1e+09, %v1359
        %v1371 = vsel %vm1368, -1e+09, %v1360
        %v1372 = vsel %vm1368, -1e+09, %v1361
        %v1373 = vsel %vm1368, -1e+09, %v1362
        %v1374 = vsel %vm1368, -1e+09, %v1363
        %v1375 = vsel %vm1368, -1e+09, %v1364
        %v1376 = vsel %vm1368, -1e+09, %v1365
        %vm1377 = vcmask 64512
        %v1378 = vsel %vm1377, %v1369, -inf
        %1379 = vmax.xlane.f32.xlu0 %v1378
        %v1380 = vpop.xlane.xlu0 %1379
        %v1381 = vsel %vm1377, %v1370, -inf
        %1382 = vmax.xlane.f32.xlu0 %v1381
        %v1383 = vpop.xlane.xlu0 %1382
        %v1384 = vsel %vm1377, %v1371, -inf
        %1385 = vmax.xlane.f32.xlu0 %v1384
        %v1386 = vpop.xlane.xlu0 %1385
        %v1387 = vsel %vm1377, %v1372, -inf
        %1388 = vmax.xlane.f32.xlu0 %v1387
        %v1389 = vpop.xlane.xlu0 %1388
        %v1390 = vsel %vm1377, %v1373, -inf
        %1391 = vmax.xlane.f32.xlu0 %v1390
        %v1392 = vpop.xlane.xlu0 %1391
        %v1393 = vsel %vm1377, %v1374, -inf
        %1394 = vmax.xlane.f32.xlu0 %v1393
        %v1395 = vpop.xlane.xlu0 %1394
        %v1396 = vsel %vm1377, %v1375, -inf
        %1397 = vmax.xlane.f32.xlu0 %v1396
        %v1398 = vpop.xlane.xlu0 %1397
        %v1399 = vsel %vm1377, %v1376, -inf
        %1400 = vmax.xlane.f32.xlu0 %v1399
        %v1401 = vpop.xlane.xlu0 %1400
        %v1402 = vsub.f32 %v1369, %v1380
        %v1403 = vsub.f32 %v1370, %v1383
        %v1404 = vsub.f32 %v1371, %v1386
        %v1405 = vsub.f32 %v1372, %v1389
        %v1406 = vsub.f32 %v1373, %v1392
        %v1407 = vsub.f32 %v1374, %v1395
        %v1408 = vsub.f32 %v1375, %v1398
        %v1409 = vsub.f32 %v1376, %v1401
        %v1410 = vmul.f32 %v1402, 1.442695
        %v1411 = vpow.pop %v1410
        %v1412 = vmul.f32 %v1403, 1.442695
        %v1413 = vpow.pop %v1412
        %v1414 = vmul.f32 %v1404, 1.442695
        %v1415 = vpow.pop %v1414
        %v1416 = vmul.f32 %v1405, 1.442695
        %v1417 = vpow.pop %v1416
        %v1418 = vmul.f32 %v1406, 1.442695
        %v1419 = vpow.pop %v1418
        %v1420 = vmul.f32 %v1407, 1.442695
        %v1421 = vpow.pop %v1420
        %v1422 = vmul.f32 %v1408, 1.442695
        %v1423 = vpow.pop %v1422
        %v1424 = vmul.f32 %v1409, 1.442695
        %v1425 = vpow.pop %v1424
        %v1426 = vsel %vm1377, %v1411, 0.0
        %1427 = vadd.xlane.f32.xlu0 %v1426
        %v1428 = vpop.xlane.xlu0 %1427
        %v1429 = vsel %vm1377, %v1413, 0.0
        %1430 = vadd.xlane.f32.xlu0 %v1429
        %v1431 = vpop.xlane.xlu0 %1430
        %v1432 = vsel %vm1377, %v1415, 0.0
        %1433 = vadd.xlane.f32.xlu0 %v1432
        %v1434 = vpop.xlane.xlu0 %1433
        %v1435 = vsel %vm1377, %v1417, 0.0
        %1436 = vadd.xlane.f32.xlu0 %v1435
        %v1437 = vpop.xlane.xlu0 %1436
        %v1438 = vsel %vm1377, %v1419, 0.0
        %1439 = vadd.xlane.f32.xlu0 %v1438
        %v1440 = vpop.xlane.xlu0 %1439
        %v1441 = vsel %vm1377, %v1421, 0.0
        %1442 = vadd.xlane.f32.xlu0 %v1441
        %v1443 = vpop.xlane.xlu0 %1442
        %v1444 = vsel %vm1377, %v1423, 0.0
        %1445 = vadd.xlane.f32.xlu0 %v1444
        %v1446 = vpop.xlane.xlu0 %1445
        %v1447 = vsel %vm1377, %v1425, 0.0
        %1448 = vadd.xlane.f32.xlu0 %v1447
        %v1449 = vpop.xlane.xlu0 %1448
        %v1450 = vrcp.pop %v1428
        %v1451 = vrcp.pop %v1431
        %v1452 = vrcp.pop %v1434
        %v1453 = vrcp.pop %v1437
        %v1454 = vrcp.pop %v1440
        %v1455 = vrcp.pop %v1443
        %v1456 = vrcp.pop %v1446
        %v1457 = vrcp.pop %v1449
        %v1458 = vmul.f32 %v1411, %v1450
        %v1459 = vmul.f32 %v1413, %v1451
        %v1460 = vmul.f32 %v1415, %v1452
        %v1461 = vmul.f32 %v1417, %v1453
        %v1462 = vmul.f32 %v1419, %v1454
        %v1463 = vmul.f32 %v1421, %v1455
        %v1464 = vmul.f32 %v1423, %v1456
        %v1465 = vmul.f32 %v1425, %v1457
        %1466 = vst.msk [vmem:[%s474] sm:$0xff] %vm1377, %v1458
        %1467 = vst.msk [vmem:[%s474 + $0x8] sm:$0xff] %vm1377, %v1459
        %1468 = vst.msk [vmem:[%s474 + $0x10] sm:$0xff] %vm1377, %v1460
        %1469 = vst.msk [vmem:[%s474 + $0x18] sm:$0xff] %vm1377, %v1461
        %1470 = vst.msk [vmem:[%s474 + $0x20] sm:$0xff] %vm1377, %v1462
        %1471 = vst.msk [vmem:[%s474 + $0x28] sm:$0xff] %vm1377, %v1463
        %1472 = vst.msk [vmem:[%s474 + $0x30] sm:$0xff] %vm1377, %v1464
        %1473 = vst.msk [vmem:[%s474 + $0x38] sm:$0xff] %vm1377, %v1465
        %v1474 = vpack.c.bf16 %v1458, %v1458
        %v1475 = vpack.c.bf16 %v1459, %v1459
        %v1476 = vpack.c.bf16 %v1460, %v1460
        %v1477 = vpack.c.bf16 %v1461, %v1461
        %v1478 = vpack.c.bf16 %v1462, %v1462
        %v1479 = vpack.c.bf16 %v1463, %v1463
        %v1480 = vpack.c.bf16 %v1464, %v1464
        %v1481 = vpack.c.bf16 %v1465, %v1465
        %v1482 = vpack.c.bf16 %v1011, %v1011
        %v1483 = vpack.c.bf16 %v1036, %v1036
        %v1484 = vpack.c.bf16 %v1061, %v1061
        %v1485 = vpack.c.bf16 %v1086, %v1086
        %v1486 = vpack.c.bf16 %v1111, %v1111
        %v1487 = vpack.c.bf16 %v1136, %v1136
        %v1488 = vpack.c.bf16 %v1161, %v1161
        %v1489 = vpack.c.bf16 %v1186, %v1186
        %v1491 = vsel %vm1377, %v1474, 0
        %vm1493 = vcmask 1043456
        %v1495 = vsel %vm1493, %v1482, 0
        %1497 = vmatpush.bf16.msra.mxu0 0
        %1498 = vmatpush.bf16.msra.mxu0 0
        %1499 = vmatpush.bf16.msra.mxu0 0
        %1500 = vmatpush.bf16.msra.mxu0 0
        %1501 = vmatpush.bf16.msra.mxu0 0
        %1502 = vmatpush.bf16.msra.mxu0 0
        %1503 = vmatpush.bf16.msra.mxu0 0
        %1504 = vmatpush.bf16.msra.mxu0 %v1495
        %1505 = vmatmul.bf16.gmra.mxu0 %v1491
        %v1506 = vpop.f32.mrf.mxu0
        %v1507 = vadd.f32 0.0, %v1506
        %v1508 = vpop.f32.mrf.mxu0
        %1509 = vdwg.mxu0
        %v1511 = vsel %vm1377, %v1475, 0
        %v1514 = vsel %vm1493, %v1483, 0
        %1516 = vmatpush.bf16.msra.mxu0 0
        %1517 = vmatpush.bf16.msra.mxu0 0
        %1518 = vmatpush.bf16.msra.mxu0 0
        %1519 = vmatpush.bf16.msra.mxu0 0
        %1520 = vmatpush.bf16.msra.mxu0 0
        %1521 = vmatpush.bf16.msra.mxu0 0
        %1522 = vmatpush.bf16.msra.mxu0 0
        %1523 = vmatpush.bf16.msra.mxu0 %v1514
        %1524 = vmatmul.bf16.gmra.mxu0 %v1511
        %v1525 = vpop.f32.mrf.mxu0
        %v1526 = vadd.f32 0.0, %v1525
        %v1527 = vpop.f32.mrf.mxu0
        %1528 = vdwg.mxu0
        %v1530 = vsel %vm1377, %v1476, 0
        %v1533 = vsel %vm1493, %v1484, 0
        %1535 = vmatpush.bf16.msra.mxu0 0
        %1536 = vmatpush.bf16.msra.mxu0 0
        %1537 = vmatpush.bf16.msra.mxu0 0
        %1538 = vmatpush.bf16.msra.mxu0 0
        %1539 = vmatpush.bf16.msra.mxu0 0
        %1540 = vmatpush.bf16.msra.mxu0 0
        %1541 = vmatpush.bf16.msra.mxu0 0
        %1542 = vmatpush.bf16.msra.mxu0 %v1533
        %1543 = vmatmul.bf16.gmra.mxu0 %v1530
        %v1544 = vpop.f32.mrf.mxu0
        %v1545 = vadd.f32 0.0, %v1544
        %v1546 = vpop.f32.mrf.mxu0
        %1547 = vdwg.mxu0
        %v1549 = vsel %vm1377, %v1477, 0
        %v1552 = vsel %vm1493, %v1485, 0
        %1554 = vmatpush.bf16.msra.mxu0 0
        %1555 = vmatpush.bf16.msra.mxu0 0
        %1556 = vmatpush.bf16.msra.mxu0 0
        %1557 = vmatpush.bf16.msra.mxu0 0
        %1558 = vmatpush.bf16.msra.mxu0 0
        %1559 = vmatpush.bf16.msra.mxu0 0
        %1560 = vmatpush.bf16.msra.mxu0 0
        %1561 = vmatpush.bf16.msra.mxu0 %v1552
        %1562 = vmatmul.bf16.gmra.mxu0 %v1549
        %v1563 = vpop.f32.mrf.mxu0
        %v1564 = vadd.f32 0.0, %v1563
        %v1565 = vpop.f32.mrf.mxu0
        %1566 = vdwg.mxu0
        %v1568 = vsel %vm1377, %v1478, 0
        %v1571 = vsel %vm1493, %v1486, 0
        %1573 = vmatpush.bf16.msra.mxu0 0
        %1574 = vmatpush.bf16.msra.mxu0 0
        %1575 = vmatpush.bf16.msra.mxu0 0
        %1576 = vmatpush.bf16.msra.mxu0 0
        %1577 = vmatpush.bf16.msra.mxu0 0
        %1578 = vmatpush.bf16.msra.mxu0 0
        %1579 = vmatpush.bf16.msra.mxu0 0
        %1580 = vmatpush.bf16.msra.mxu0 %v1571
        %1581 = vmatmul.bf16.gmra.mxu0 %v1568
        %v1582 = vpop.f32.mrf.mxu0
        %v1583 = vadd.f32 0.0, %v1582
        %v1584 = vpop.f32.mrf.mxu0
        %1585 = vdwg.mxu0
        %v1587 = vsel %vm1377, %v1479, 0
        %v1590 = vsel %vm1493, %v1487, 0
        %1592 = vmatpush.bf16.msra.mxu0 0
        %1593 = vmatpush.bf16.msra.mxu0 0
        %1594 = vmatpush.bf16.msra.mxu0 0
        %1595 = vmatpush.bf16.msra.mxu0 0
        %1596 = vmatpush.bf16.msra.mxu0 0
        %1597 = vmatpush.bf16.msra.mxu0 0
        %1598 = vmatpush.bf16.msra.mxu0 0
        %1599 = vmatpush.bf16.msra.mxu0 %v1590
        %1600 = vmatmul.bf16.gmra.mxu0 %v1587
        %v1601 = vpop.f32.mrf.mxu0
        %v1602 = vadd.f32 0.0, %v1601
        %v1603 = vpop.f32.mrf.mxu0
        %1604 = vdwg.mxu0
        %v1606 = vsel %vm1377, %v1480, 0
        %v1609 = vsel %vm1493, %v1488, 0
        %1611 = vmatpush.bf16.msra.mxu0 0
        %1612 = vmatpush.bf16.msra.mxu0 0
        %1613 = vmatpush.bf16.msra.mxu0 0
        %1614 = vmatpush.bf16.msra.mxu0 0
        %1615 = vmatpush.bf16.msra.mxu0 0
        %1616 = vmatpush.bf16.msra.mxu0 0
        %1617 = vmatpush.bf16.msra.mxu0 0
        %1618 = vmatpush.bf16.msra.mxu0 %v1609
        %1619 = vmatmul.bf16.gmra.mxu0 %v1606
        %v1620 = vpop.f32.mrf.mxu0
        %v1621 = vadd.f32 0.0, %v1620
        %v1622 = vpop.f32.mrf.mxu0
        %1623 = vdwg.mxu0
        %v1625 = vsel %vm1377, %v1481, 0
        %v1628 = vsel %vm1493, %v1489, 0
        %1630 = vmatpush.bf16.msra.mxu0 0
        %1631 = vmatpush.bf16.msra.mxu0 0
        %1632 = vmatpush.bf16.msra.mxu0 0
        %1633 = vmatpush.bf16.msra.mxu0 0
        %1634 = vmatpush.bf16.msra.mxu0 0
        %1635 = vmatpush.bf16.msra.mxu0 0
        %1636 = vmatpush.bf16.msra.mxu0 0
        %1637 = vmatpush.bf16.msra.mxu0 %v1628
        %1638 = vmatmul.bf16.gmra.mxu0 %v1625
        %v1639 = vpop.f32.mrf.mxu0
        %v1640 = vadd.f32 0.0, %v1639
        %v1641 = vpop.f32.mrf.mxu0
        %1642 = vdwg.mxu0
        %v1643 = vpack.c.bf16 %v1507, %v1507
        %v1644 = vpack.c.bf16 %v1526, %v1526
        %v1645 = vpack.c.bf16 %v1545, %v1545
        %v1646 = vpack.c.bf16 %v1564, %v1564
        %v1647 = vpack.c.bf16 %v1583, %v1583
        %v1648 = vpack.c.bf16 %v1602, %v1602
        %v1649 = vpack.c.bf16 %v1621, %v1621
        %v1650 = vpack.c.bf16 %v1640, %v1640
        %v1651 = vld [vmem:[%s7] sm:$0xf]
        %v1652 = vld [vmem:[%s7 + $0x4] sm:$0xf]
        %v1653 = vld [vmem:[%s7 + $0x8] sm:$0xf]
        %v1654 = vld [vmem:[%s7 + $0xc] sm:$0xf]
        %v1655 = vld [vmem:[%s7 + $0x10] sm:$0xf]
        %v1656 = vld [vmem:[%s7 + $0x14] sm:$0xf]
        %v1657 = vld [vmem:[%s7 + $0x18] sm:$0xf]
        %v1658 = vld [vmem:[%s7 + $0x1c] sm:$0xf]
        %v1659 = vld [vmem:[%s7 + $0x20] sm:$0xf]
        %v1660 = vld [vmem:[%s7 + $0x24] sm:$0xf]
        %v1661 = vld [vmem:[%s7 + $0x28] sm:$0xf]
        %v1662 = vld [vmem:[%s7 + $0x2c] sm:$0xf]
        %v1663 = vld [vmem:[%s7 + $0x30] sm:$0xf]
        %v1664 = vld [vmem:[%s7 + $0x34] sm:$0xf]
        %v1665 = vld [vmem:[%s7 + $0x38] sm:$0xf]
        %v1666 = vld [vmem:[%s7 + $0x3c] sm:$0xf]
        %v1667 = vld [vmem:[%s7 + $0x40] sm:$0xf]
        %v1668 = vld [vmem:[%s7 + $0x44] sm:$0xf]
        %v1669 = vld [vmem:[%s7 + $0x48] sm:$0xf]
        %v1670 = vld [vmem:[%s7 + $0x4c] sm:$0xf]
        %v1671 = vld [vmem:[%s7 + $0x50] sm:$0xf]
        %v1672 = vld [vmem:[%s7 + $0x54] sm:$0xf]
        %v1673 = vld [vmem:[%s7 + $0x58] sm:$0xf]
        %v1674 = vld [vmem:[%s7 + $0x5c] sm:$0xf]
        %v1675 = vld [vmem:[%s7 + $0x60] sm:$0xf]
        %v1676 = vld [vmem:[%s7 + $0x64] sm:$0xf]
        %v1677 = vld [vmem:[%s7 + $0x68] sm:$0xf]
        %v1678 = vld [vmem:[%s7 + $0x6c] sm:$0xf]
        %v1679 = vld [vmem:[%s7 + $0x70] sm:$0xf]
        %v1680 = vld [vmem:[%s7 + $0x74] sm:$0xf]
        %v1681 = vld [vmem:[%s7 + $0x78] sm:$0xf]
        %v1682 = vld [vmem:[%s7 + $0x7c] sm:$0xf]
        %v1683 = vld [vmem:[%s7 + $0x80] sm:$0xf]
        %v1684 = vld [vmem:[%s7 + $0x84] sm:$0xf]
        %v1685 = vld [vmem:[%s7 + $0x88] sm:$0xf]
        %v1686 = vld [vmem:[%s7 + $0x8c] sm:$0xf]
        %v1687 = vld [vmem:[%s7 + $0x90] sm:$0xf]
        %v1688 = vld [vmem:[%s7 + $0x94] sm:$0xf]
        %v1689 = vld [vmem:[%s7 + $0x98] sm:$0xf]
        %v1690 = vld [vmem:[%s7 + $0x9c] sm:$0xf]
        %v1691 = vld [vmem:[%s7 + $0xa0] sm:$0xf]
        %v1692 = vld [vmem:[%s7 + $0xa4] sm:$0xf]
        %v1693 = vld [vmem:[%s7 + $0xa8] sm:$0xf]
        %v1694 = vld [vmem:[%s7 + $0xac] sm:$0xf]
        %v1695 = vld [vmem:[%s7 + $0xb0] sm:$0xf]
        %v1696 = vld [vmem:[%s7 + $0xb4] sm:$0xf]
        %v1697 = vld [vmem:[%s7 + $0xb8] sm:$0xf]
        %v1698 = vld [vmem:[%s7 + $0xbc] sm:$0xf]
        %v1699 = vld [vmem:[%s7 + $0xc0] sm:$0xf]
        %v1700 = vld [vmem:[%s7 + $0xc4] sm:$0xf]
        %v1701 = vld [vmem:[%s7 + $0xc8] sm:$0xf]
        %v1702 = vld [vmem:[%s7 + $0xcc] sm:$0xf]
        %v1703 = vld [vmem:[%s7 + $0xd0] sm:$0xf]
        %v1704 = vld [vmem:[%s7 + $0xd4] sm:$0xf]
        %v1705 = vld [vmem:[%s7 + $0xd8] sm:$0xf]
        %v1706 = vld [vmem:[%s7 + $0xdc] sm:$0xf]
        %v1707 = vld [vmem:[%s7 + $0xe0] sm:$0xf]
        %v1708 = vld [vmem:[%s7 + $0xe4] sm:$0xf]
        %v1709 = vld [vmem:[%s7 + $0xe8] sm:$0xf]
        %v1710 = vld [vmem:[%s7 + $0xec] sm:$0xf]
        %v1711 = vld [vmem:[%s7 + $0xf0] sm:$0xf]
        %v1712 = vld [vmem:[%s7 + $0xf4] sm:$0xf]
        %v1713 = vld [vmem:[%s7 + $0xf8] sm:$0xf]
        %v1714 = vld [vmem:[%s7 + $0xfc] sm:$0xf]
        %v1723 = vunpack.c.l.b16 %v1651
        %v1724 = vunpack.c.l.b16 %v1652
        %v1725 = vunpack.c.l.b16 %v1653
        %v1726 = vunpack.c.l.b16 %v1654
        %v1727 = vunpack.c.l.b16 %v1655
        %v1728 = vunpack.c.l.b16 %v1656
        %v1729 = vunpack.c.l.b16 %v1657
        %v1730 = vunpack.c.l.b16 %v1658
        %v1731 = vpack.c.b16 %v1724, %v1723
        %v1732 = vpack.c.b16 %v1726, %v1725
        %v1733 = vpack.c.b16 %v1728, %v1727
        %v1734 = vpack.c.b16 %v1730, %v1729
        %v1740 = vsel %vm1205, %v1643, 0
        %1742 = vmatpush.bf16.msra.mxu0 0
        %1743 = vmatpush.bf16.msra.mxu0 0
        %1744 = vmatpush.bf16.msra.mxu0 0
        %1745 = vmatpush.bf16.msra.mxu0 0
        %1746 = vmatpush.bf16.msra.mxu0 %v1734
        %1747 = vmatpush.bf16.msra.mxu0 %v1733
        %1748 = vmatpush.bf16.msra.mxu0 %v1732
        %1749 = vmatpush.bf16.msra.mxu0 %v1731
        %1750 = vmatmul.bf16.gmra.mxu0 %v1740
        %v1751 = vpop.f32.mrf.mxu0
        %v1752 = vadd.f32 0.0, %v1751
        %v1753 = vpop.f32.mrf.mxu0
        %1754 = vdwg.mxu0
        %v1763 = vunpack.c.l.b16 %v1659
        %v1764 = vunpack.c.l.b16 %v1660
        %v1765 = vunpack.c.l.b16 %v1661
        %v1766 = vunpack.c.l.b16 %v1662
        %v1767 = vunpack.c.l.b16 %v1663
        %v1768 = vunpack.c.l.b16 %v1664
        %v1769 = vunpack.c.l.b16 %v1665
        %v1770 = vunpack.c.l.b16 %v1666
        %v1771 = vpack.c.b16 %v1764, %v1763
        %v1772 = vpack.c.b16 %v1766, %v1765
        %v1773 = vpack.c.b16 %v1768, %v1767
        %v1774 = vpack.c.b16 %v1770, %v1769
        %v1780 = vsel %vm1205, %v1644, 0
        %1782 = vmatpush.bf16.msra.mxu0 0
        %1783 = vmatpush.bf16.msra.mxu0 0
        %1784 = vmatpush.bf16.msra.mxu0 0
        %1785 = vmatpush.bf16.msra.mxu0 0
        %1786 = vmatpush.bf16.msra.mxu0 %v1774
        %1787 = vmatpush.bf16.msra.mxu0 %v1773
        %1788 = vmatpush.bf16.msra.mxu0 %v1772
        %1789 = vmatpush.bf16.msra.mxu0 %v1771
        %1790 = vmatmul.bf16.gmra.mxu0 %v1780
        %v1791 = vpop.f32.mrf.mxu0
        %v1792 = vadd.f32 0.0, %v1791
        %v1793 = vpop.f32.mrf.mxu0
        %1794 = vdwg.mxu0
        %v1803 = vunpack.c.l.b16 %v1667
        %v1804 = vunpack.c.l.b16 %v1668
        %v1805 = vunpack.c.l.b16 %v1669
        %v1806 = vunpack.c.l.b16 %v1670
        %v1807 = vunpack.c.l.b16 %v1671
        %v1808 = vunpack.c.l.b16 %v1672
        %v1809 = vunpack.c.l.b16 %v1673
        %v1810 = vunpack.c.l.b16 %v1674
        %v1811 = vpack.c.b16 %v1804, %v1803
        %v1812 = vpack.c.b16 %v1806, %v1805
        %v1813 = vpack.c.b16 %v1808, %v1807
        %v1814 = vpack.c.b16 %v1810, %v1809
        %v1820 = vsel %vm1205, %v1645, 0
        %1822 = vmatpush.bf16.msra.mxu0 0
        %1823 = vmatpush.bf16.msra.mxu0 0
        %1824 = vmatpush.bf16.msra.mxu0 0
        %1825 = vmatpush.bf16.msra.mxu0 0
        %1826 = vmatpush.bf16.msra.mxu0 %v1814
        %1827 = vmatpush.bf16.msra.mxu0 %v1813
        %1828 = vmatpush.bf16.msra.mxu0 %v1812
        %1829 = vmatpush.bf16.msra.mxu0 %v1811
        %1830 = vmatmul.bf16.gmra.mxu0 %v1820
        %v1831 = vpop.f32.mrf.mxu0
        %v1832 = vadd.f32 0.0, %v1831
        %v1833 = vpop.f32.mrf.mxu0
        %1834 = vdwg.mxu0
        %v1843 = vunpack.c.l.b16 %v1675
        %v1844 = vunpack.c.l.b16 %v1676
        %v1845 = vunpack.c.l.b16 %v1677
        %v1846 = vunpack.c.l.b16 %v1678
        %v1847 = vunpack.c.l.b16 %v1679
        %v1848 = vunpack.c.l.b16 %v1680
        %v1849 = vunpack.c.l.b16 %v1681
        %v1850 = vunpack.c.l.b16 %v1682
        %v1851 = vpack.c.b16 %v1844, %v1843
        %v1852 = vpack.c.b16 %v1846, %v1845
        %v1853 = vpack.c.b16 %v1848, %v1847
        %v1854 = vpack.c.b16 %v1850, %v1849
        %v1860 = vsel %vm1205, %v1646, 0
        %1862 = vmatpush.bf16.msra.mxu0 0
        %1863 = vmatpush.bf16.msra.mxu0 0
        %1864 = vmatpush.bf16.msra.mxu0 0
        %1865 = vmatpush.bf16.msra.mxu0 0
        %1866 = vmatpush.bf16.msra.mxu0 %v1854
        %1867 = vmatpush.bf16.msra.mxu0 %v1853
        %1868 = vmatpush.bf16.msra.mxu0 %v1852
        %1869 = vmatpush.bf16.msra.mxu0 %v1851
        %1870 = vmatmul.bf16.gmra.mxu0 %v1860
        %v1871 = vpop.f32.mrf.mxu0
        %v1872 = vadd.f32 0.0, %v1871
        %v1873 = vpop.f32.mrf.mxu0
        %1874 = vdwg.mxu0
        %v1883 = vunpack.c.l.b16 %v1683
        %v1884 = vunpack.c.l.b16 %v1684
        %v1885 = vunpack.c.l.b16 %v1685
        %v1886 = vunpack.c.l.b16 %v1686
        %v1887 = vunpack.c.l.b16 %v1687
        %v1888 = vunpack.c.l.b16 %v1688
        %v1889 = vunpack.c.l.b16 %v1689
        %v1890 = vunpack.c.l.b16 %v1690
        %v1891 = vpack.c.b16 %v1884, %v1883
        %v1892 = vpack.c.b16 %v1886, %v1885
        %v1893 = vpack.c.b16 %v1888, %v1887
        %v1894 = vpack.c.b16 %v1890, %v1889
        %v1900 = vsel %vm1205, %v1647, 0
        %1902 = vmatpush.bf16.msra.mxu0 0
        %1903 = vmatpush.bf16.msra.mxu0 0
        %1904 = vmatpush.bf16.msra.mxu0 0
        %1905 = vmatpush.bf16.msra.mxu0 0
        %1906 = vmatpush.bf16.msra.mxu0 %v1894
        %1907 = vmatpush.bf16.msra.mxu0 %v1893
        %1908 = vmatpush.bf16.msra.mxu0 %v1892
        %1909 = vmatpush.bf16.msra.mxu0 %v1891
        %1910 = vmatmul.bf16.gmra.mxu0 %v1900
        %v1911 = vpop.f32.mrf.mxu0
        %v1912 = vadd.f32 0.0, %v1911
        %v1913 = vpop.f32.mrf.mxu0
        %1914 = vdwg.mxu0
        %v1923 = vunpack.c.l.b16 %v1691
        %v1924 = vunpack.c.l.b16 %v1692
        %v1925 = vunpack.c.l.b16 %v1693
        %v1926 = vunpack.c.l.b16 %v1694
        %v1927 = vunpack.c.l.b16 %v1695
        %v1928 = vunpack.c.l.b16 %v1696
        %v1929 = vunpack.c.l.b16 %v1697
        %v1930 = vunpack.c.l.b16 %v1698
        %v1931 = vpack.c.b16 %v1924, %v1923
        %v1932 = vpack.c.b16 %v1926, %v1925
        %v1933 = vpack.c.b16 %v1928, %v1927
        %v1934 = vpack.c.b16 %v1930, %v1929
        %v1940 = vsel %vm1205, %v1648, 0
        %1942 = vmatpush.bf16.msra.mxu0 0
        %1943 = vmatpush.bf16.msra.mxu0 0
        %1944 = vmatpush.bf16.msra.mxu0 0
        %1945 = vmatpush.bf16.msra.mxu0 0
        %1946 = vmatpush.bf16.msra.mxu0 %v1934
        %1947 = vmatpush.bf16.msra.mxu0 %v1933
        %1948 = vmatpush.bf16.msra.mxu0 %v1932
        %1949 = vmatpush.bf16.msra.mxu0 %v1931
        %1950 = vmatmul.bf16.gmra.mxu0 %v1940
        %v1951 = vpop.f32.mrf.mxu0
        %v1952 = vadd.f32 0.0, %v1951
        %v1953 = vpop.f32.mrf.mxu0
        %1954 = vdwg.mxu0
        %v1963 = vunpack.c.l.b16 %v1699
        %v1964 = vunpack.c.l.b16 %v1700
        %v1965 = vunpack.c.l.b16 %v1701
        %v1966 = vunpack.c.l.b16 %v1702
        %v1967 = vunpack.c.l.b16 %v1703
        %v1968 = vunpack.c.l.b16 %v1704
        %v1969 = vunpack.c.l.b16 %v1705
        %v1970 = vunpack.c.l.b16 %v1706
        %v1971 = vpack.c.b16 %v1964, %v1963
        %v1972 = vpack.c.b16 %v1966, %v1965
        %v1973 = vpack.c.b16 %v1968, %v1967
        %v1974 = vpack.c.b16 %v1970, %v1969
        %v1980 = vsel %vm1205, %v1649, 0
        %1982 = vmatpush.bf16.msra.mxu0 0
        %1983 = vmatpush.bf16.msra.mxu0 0
        %1984 = vmatpush.bf16.msra.mxu0 0
        %1985 = vmatpush.bf16.msra.mxu0 0
        %1986 = vmatpush.bf16.msra.mxu0 %v1974
        %1987 = vmatpush.bf16.msra.mxu0 %v1973
        %1988 = vmatpush.bf16.msra.mxu0 %v1972
        %1989 = vmatpush.bf16.msra.mxu0 %v1971
        %1990 = vmatmul.bf16.gmra.mxu0 %v1980
        %v1991 = vpop.f32.mrf.mxu0
        %v1992 = vadd.f32 0.0, %v1991
        %v1993 = vpop.f32.mrf.mxu0
        %1994 = vdwg.mxu0
        %v2003 = vunpack.c.l.b16 %v1707
        %v2004 = vunpack.c.l.b16 %v1708
        %v2005 = vunpack.c.l.b16 %v1709
        %v2006 = vunpack.c.l.b16 %v1710
        %v2007 = vunpack.c.l.b16 %v1711
        %v2008 = vunpack.c.l.b16 %v1712
        %v2009 = vunpack.c.l.b16 %v1713
        %v2010 = vunpack.c.l.b16 %v1714
        %v2011 = vpack.c.b16 %v2004, %v2003
        %v2012 = vpack.c.b16 %v2006, %v2005
        %v2013 = vpack.c.b16 %v2008, %v2007
        %v2014 = vpack.c.b16 %v2010, %v2009
        %v2020 = vsel %vm1205, %v1650, 0
        %2022 = vmatpush.bf16.msra.mxu0 0
        %2023 = vmatpush.bf16.msra.mxu0 0
        %2024 = vmatpush.bf16.msra.mxu0 0
        %2025 = vmatpush.bf16.msra.mxu0 0
        %2026 = vmatpush.bf16.msra.mxu0 %v2014
        %2027 = vmatpush.bf16.msra.mxu0 %v2013
        %2028 = vmatpush.bf16.msra.mxu0 %v2012
        %2029 = vmatpush.bf16.msra.mxu0 %v2011
        %2030 = vmatmul.bf16.gmra.mxu0 %v2020
        %v2031 = vpop.f32.mrf.mxu0
        %v2032 = vadd.f32 0.0, %v2031
        %v2033 = vpop.f32.mrf.mxu0
        %2034 = vdwg.mxu0
        %v2035 = vsel %vm527, %v1752, 0.0
        %v2036 = vsel %vm527, %v1792, 0.0
        %v2037 = vadd.f32 %v2035, %v2036
        %v2038 = vsel %vm527, %v1832, 0.0
        %v2039 = vadd.f32 %v2037, %v2038
        %v2040 = vsel %vm527, %v1872, 0.0
        %v2041 = vadd.f32 %v2039, %v2040
        %v2042 = vsel %vm527, %v1912, 0.0
        %v2043 = vadd.f32 %v2041, %v2042
        %v2044 = vsel %vm527, %v1952, 0.0
        %v2045 = vadd.f32 %v2043, %v2044
        %v2046 = vsel %vm527, %v1992, 0.0
        %v2047 = vadd.f32 %v2045, %v2046
        %v2048 = vsel %vm527, %v2032, 0.0
        %v2049 = vadd.f32 %v2047, %v2048
        %v2050 = vadd.f32 %v2049, %v476
        %v2051 = vsel %vm527, %v2050, 0.0
        %2052 = vadd.xlane.f32.xlu0 %v2051
        %v2053 = vpop.xlane.xlu0 %2052
        %v2054 = vrcp.pop 32.0
        %v2055 = vmul.f32 32.0, %v2054
        %v2056 = vsub.f32 1.0, %v2055
        %v2057 = vmul.f32 %v2054, %v2056
        %v2058 = vadd.f32 %v2054, %v2057
        %vm2059 = vweird.f32 %v2054
        %v2060 = vsel %vm2059, %v2054, %v2058
        %v2061 = vmul.f32 %v2053, %v2060
        %v2062 = vsub.f32 %v2050, %v2061
        %v2063 = vmul.f32 %v2062, %v2062
        %v2064 = vsel %vm527, %v2063, 0.0
        %2065 = vadd.xlane.f32.xlu0 %v2064
        %v2066 = vpop.xlane.xlu0 %2065
        %v2067 = vmul.f32 %v2066, %v2060
        %v2068 = vadd.f32 %v2067, 1e-05
        %v2069 = vrsqrt.pop %v2068
        %v2070 = vmul.f32 %v2069, %v2068
        %v2071 = vmul.f32 %v2070, %v2069
        %v2072 = vmul.f32 0.5, %v2071
        %v2073 = vsub.f32 1.5, %v2072
        %v2074 = vmul.f32 %v2069, %v2073
        %vm2075 = vweird.f32 %v2068
        %vm2076 = vweird.f32 %v2069
        %vm2077 = vmor %vm2075, %vm2076
        %v2078 = vsel %vm2077, %v2069, %v2074
        %v2079 = vmul.f32 %v2062, %v2078
        %2080 = vst.msk [vmem:[%s467] sm:$0xff] %vm527, %v2079
        %s2081 = sand.u32 %s232, 1
        %s2082 = scalar_lea.sflag [#allocation4], %s2081
        %s2083 = sand.u32 %s232, 1
        %s2084 = smul.addr %s2083, 8
        %s2085 = scalar_lea.vmem [#allocation10], %s2084
        %s2086 = sand.u32 %s258, 1
        %s2087 = scalar_lea.sflag [#allocation12], %s2086
        %s2088 = sand.u32 %s258, 1
        %s2089 = smul.addr %s2088, 64
        %s2090 = scalar_lea.vmem [#allocation11], %s2089
        // Predicated region
        $region69: #{tpu_custom_call.1} parent=51 // pred_check
          %p2091 = pneg %p242
        $region70: #{tpu_custom_call.1} parent=51 // pred_check_branch
          %2093 = sbr.rel (%p2091) target = $region72
        $region71: #{tpu_custom_call.1} parent=51 // pred_region
          %2095 = vsyncadd %s2082, 0
          %s2096 = smul.addr %s36, 8
          %s2097 = scalar_lea.hbm %s8, %s2096
          %s2099 = sshll.u32 %s2085, 4
          %s2100 = int_to_ptr.vmem [resolvable:$true] %s2099
          %s2101 = sshll.u32 %s2097, 4
          %s2102 = int_to_ptr.hbm [resolvable:$true] %s2101
          %2104 = dma.vmem_to_hbm [thread:$0]  %s2100, 128, %s2102, %s2082
        $region72: #{tpu_custom_call.1} parent=51 // pred_fallthru
          _
        // Predicated region
        $region73: #{tpu_custom_call.1} parent=51 // pred_check
          %p2105 = pneg %p268
        $region74: #{tpu_custom_call.1} parent=51 // pred_check_branch
          %2107 = sbr.rel (%p2105) target = $region76
        $region75: #{tpu_custom_call.1} parent=51 // pred_region
          %2109 = vsyncadd %s2087, 0
          %s2110 = smul.addr %s36, 8
          %s2111 = smul.addr %s2110, 8
          %s2112 = scalar_lea.hbm %s9, %s2111
          %s2113 = sshll.u32 %s2090, 4
          %s2114 = int_to_ptr.vmem [resolvable:$true] %s2113
          %s2115 = sshll.u32 %s2112, 4
          %s2116 = int_to_ptr.hbm [resolvable:$true] %s2115
          %2121 = dma.vmem_to_hbm [thread:$0]  %s2114, 1024, %s2116, %s2087, 128, 128, 8
        $region76: #{tpu_custom_call.1} parent=51 // pred_fallthru
          _
      $region52: #{tpu_custom_call.1} parent=5 // pred_fallthru
        _
      %p2122 = scmp.le.s32.totalorder 2, %s31
      // Predicated region
      $region77: #{tpu_custom_call.1} parent=5 // pred_check
        %p2123 = pneg %p2122
      $region78: #{tpu_custom_call.1} parent=5 // pred_check_branch
        %2125 = sbr.rel (%p2123) target = $region80
      $region79: #{tpu_custom_call.1} parent=5 // pred_region
        %s2126 = ssub.s32 %s31, 2
        // Predicated region
        $region81: #{tpu_custom_call.1} parent=79 // pred_check
          %p2127 = pneg %p248
        $region82: #{tpu_custom_call.1} parent=79 // pred_check_branch
          %2129 = sbr.rel (%p2127) target = $region84
        $region83: #{tpu_custom_call.1} parent=79 // pred_region
          %s2130 = sand.u32 %s233, 1
          %s2131 = scalar_lea.sflag [#allocation4], %s2130
          %s2132 = sand.u32 %s233, 1
          %s2133 = smul.addr %s2132, 8
          %s2134 = scalar_lea.vmem [#allocation10], %s2133
          %2136 = dma.done %s2131, 128
        $region84: #{tpu_custom_call.1} parent=79 // pred_fallthru
          _
        // Predicated region
        $region85: #{tpu_custom_call.1} parent=79 // pred_check
          %p2137 = pneg %p274
        $region86: #{tpu_custom_call.1} parent=79 // pred_check_branch
          %2139 = sbr.rel (%p2137) target = $region88
        $region87: #{tpu_custom_call.1} parent=79 // pred_region
          %s2140 = sand.u32 %s259, 1
          %s2141 = scalar_lea.sflag [#allocation12], %s2140
          %s2142 = sand.u32 %s259, 1
          %s2143 = smul.addr %s2142, 64
          %s2144 = scalar_lea.vmem [#allocation11], %s2143
          %2146 = dma.done %s2141, 1024
        $region88: #{tpu_custom_call.1} parent=79 // pred_fallthru
          _
      $region80: #{tpu_custom_call.1} parent=5 // pred_fallthru
        _
    $region6: #{tpu_custom_call.1} parent=1 // loop_footer
      %s35 = sadd.s32 1, %s31
    $region7: #{tpu_custom_call.1} parent=1 // loop_footer_branch
      %30 = sbr.rel target = $region3
    $region8: #{tpu_custom_call.1} parent=1 // loop_exit
      _
    %2147 = vsyncpa [#allocation3], 1
    %s2148 = scalar_lea.sflag [#allocation3], 1
    %2149 = vsyncpa %s2148, 1
    %2150 = vsyncpa [#allocation6], 1
    %s2151 = scalar_lea.sflag [#allocation6], 1
    %2152 = vsyncpa %s2151, 1
    %2153 = vsyncpa [#allocation9], 1
    %s2154 = scalar_lea.sflag [#allocation9], 1
    %2155 = vsyncpa %s2154, 1
    %2156 = vsyncpa [#allocation4], 1
    %s2157 = scalar_lea.sflag [#allocation4], 1
    %2158 = vsyncpa %s2157, 1
    %2159 = vsyncpa [#allocation12], 1
    %s2160 = scalar_lea.sflag [#allocation12], 1
    %2161 = vsyncpa %s2160, 1

</llo_original>
